<compile_context>
chip_gen: v5e
topology: v5e:2x2
jax: 0.10.0
libtpu: 0.0.40
codegen_flags: <defaults>
</compile_context>

<pallas_src>
import functools

import jax
import jax.numpy as jnp
from jax import lax
from jax.experimental import pallas as pl
from jax.experimental.pallas import tpu as pltpu


# --------------------------------------------------------------------------
# Small in-kernel reduction helpers: (8, Dp8) -> (1, 1)
# --------------------------------------------------------------------------
def _rsum(x):
    return jnp.sum(jnp.sum(x, axis=1, keepdims=True), axis=0, keepdims=True)


def _rmax(x):
    return jnp.max(jnp.max(x, axis=1, keepdims=True), axis=0, keepdims=True)


# --------------------------------------------------------------------------
# Pallas kernel: per-batch-element SSD loss partial sums.
#   loc_ref   : (1, 4, 8, Dp8) f32
#   conf_ref  : (1, C, 8, Dp8) f32
#   loc_t_ref : (1, 4, 8, Dp8) f32
#   label_ref : (1, 8, Dp8)    int32
#   out_ref   : (1, 8, 128)    f32   row0=loss_l, row1=loss_c, row2=num_pos
# --------------------------------------------------------------------------
def _multibox_loss_kernel(loc_ref, conf_ref, loc_t_ref, label_ref, out_ref,
                          *, negpos_ratio, num_dbox, num_classes, n_bisect):
    C = num_classes
    label = label_ref[0]                               # (8, Dp8) int32
    pos = label > 0                                    # (8, Dp8)
    pos_f = pos.astype(jnp.float32)
    num_pos = _rsum(pos_f)                             # (1, 1)

    # ---- streaming softmax cross entropy over the class (major) axis ------
    m = conf_ref[0, 0]                                 # (8, Dp8)
    for c in range(1, C):
        m = jnp.maximum(m, conf_ref[0, c])
    s = jnp.zeros_like(m)
    tgt = jnp.zeros_like(m)
    for c in range(C):
        cc = conf_ref[0, c]
        s = s + jnp.exp(cc - m)
        tgt = tgt + jnp.where(label == c, cc, 0.0)
    ce = m + jnp.log(s) - tgt                          # (8, Dp8), >= 0 at valid cols

    # ---- smooth L1 over positive dboxes (reduction='sum') -----------------
    sl1 = jnp.zeros_like(pos_f)
    for j in range(4):
        d = loc_ref[0, j] - loc_t_ref[0, j]            # (8, Dp8)
        ad = jnp.abs(d)
        sl1 = sl1 + jnp.where(ad < 1.0, 0.5 * d * d, ad - 0.5)
    loss_l_b = _rsum(sl1 * pos_f)                      # (1, 1)

    # ---- hard negative mining: sum of top-k positives-zeroed CEs ----------
    # Padded dbox positions (flat index >= num_dbox) are masked to 0 so they
    # never enter the negative pool; positives are zeroed as in the reference.
    sub = lax.broadcasted_iota(jnp.int32, label.shape, 0)
    lane = lax.broadcasted_iota(jnp.int32, label.shape, 1)
    valid = (sub * label.shape[1] + lane) < num_dbox
    neg_sel = jnp.logical_and(valid, jnp.logical_not(pos))
    ce_n = jnp.where(neg_sel, ce, 0.0)                 # (8, Dp8)

    # k = min(negpos_ratio * num_pos, num_dbox)  (matches torch clamp(max=D))
    k = jnp.minimum(num_pos * negpos_ratio, float(num_dbox))   # (1, 1)

    lo0 = jnp.full((1, 1), -1.0, jnp.float32)
    hi0 = _rmax(ce_n)

    def _bisect(_, carry):
        lo, hi = carry
        mid = 0.5 * (lo + hi)
        cnt = _rsum((ce_n > mid).astype(jnp.float32))
        ge = cnt >= k
        return jnp.where(ge, mid, lo), jnp.where(ge, hi, mid)

    # 24 iterations: error <= k * range * 2^-24, far below f32 sum noise.
    _, thresh = lax.fori_loop(0, n_bisect, _bisect, (lo0, hi0), unroll=True)

    gt = (ce_n > thresh).astype(jnp.float32)           # (8, Dp8)
    cnt_gt = _rsum(gt)                                 # (1, 1)
    topk_sum = _rsum(ce_n * gt) + jnp.maximum(k - cnt_gt, 0.0) * thresh
    loss_c_b = _rsum(ce * pos_f) + topk_sum            # (1, 1)

    # ---- pack the three per-batch partials into one output tile -----------
    row = lax.broadcasted_iota(jnp.int32, (8, 128), 0)
    out_ref[0] = jnp.where(row == 0, loss_l_b,
                           jnp.where(row == 1, loss_c_b, num_pos))


# --------------------------------------------------------------------------
# Plain-JAX glue: SSD `match` (box assignment + offset encoding).
# --------------------------------------------------------------------------
def _point_form(boxes):
    return jnp.concatenate([boxes[:, :2] - boxes[:, 2:] / 2.0,
                            boxes[:, :2] + boxes[:, 2:] / 2.0], axis=1)


def _jaccard(box_a, box_b):
    max_xy = jnp.minimum(box_a[:, None, 2:], box_b[None, :, 2:])
    min_xy = jnp.maximum(box_a[:, None, :2], box_b[None, :, :2])
    inter = jnp.maximum(max_xy - min_xy, 0.0)
    inter = inter[..., 0] * inter[..., 1]
    area_a = ((box_a[:, 2] - box_a[:, 0]) * (box_a[:, 3] - box_a[:, 1]))[:, None]
    area_b = ((box_b[:, 2] - box_b[:, 0]) * (box_b[:, 3] - box_b[:, 1]))[None, :]
    return inter / (area_a + area_b - inter)


def _encode(matched, priors, variances):
    g_cxcy = (matched[:, :2] + matched[:, 2:]) / 2.0 - priors[:, :2]
    g_cxcy = g_cxcy / (variances[0] * priors[:, 2:])
    g_wh = (matched[:, 2:] - matched[:, :2]) / priors[:, 2:]
    g_wh = jnp.log(g_wh) / variances[1]
    return jnp.concatenate([g_cxcy, g_wh], axis=1)


def _match(threshold, truths, priors, variances, labels):
    overlaps = _jaccard(truths, _point_form(priors))          # (num_obj, D)
    best_prior_idx = jnp.argmax(overlaps, axis=1)             # (num_obj,)
    best_truth_overlap = jnp.max(overlaps, axis=0)            # (D,)
    best_truth_idx = jnp.argmax(overlaps, axis=0)             # (D,)
    best_truth_overlap = best_truth_overlap.at[best_prior_idx].set(2.0)
    best_truth_idx = best_truth_idx.at[best_prior_idx].set(
        jnp.arange(truths.shape[0]))
    matches = truths[best_truth_idx]                          # (D, 4)
    conf = labels[best_truth_idx] + 1.0
    conf = jnp.where(best_truth_overlap < threshold, 0.0, conf)
    loc = _encode(matches, priors, variances)
    return loc.astype(jnp.float32), conf.astype(jnp.int32)


# --------------------------------------------------------------------------
# Wrapper == MultiBoxLoss.forward
# --------------------------------------------------------------------------
def multibox_loss(loc_data, conf_data, dbox_list, targets,
                  jaccard_thresh=0.5, neg_pos=3):
    B, D, _ = loc_data.shape
    C = conf_data.shape[2]
    variance = (0.1, 0.2)

    # dbox axis padded to a multiple of 8*128 so it folds onto full
    # (8 sublane, 128 lane) vregs: flat dbox d -> (d // Dp8, d % Dp8).
    Dp = ((D + 1023) // 1024) * 1024
    Dp8 = Dp // 8
    pad_d = Dp - D

    # --- match (batch element 0 only; see header comment) -------------------
    loc_t = jnp.zeros((B, D, 4), jnp.float32)
    conf_t = jnp.zeros((B, D), jnp.int32)
    truths = targets[0][:, :-1]
    labels = targets[0][:, -1]
    loc0, conf0 = _match(jaccard_thresh, truths, dbox_list, variance, labels)
    loc_t = loc_t.at[0].set(loc0)
    conf_t = conf_t.at[0].set(conf0)

    # --- lane/sublane-dense layouts: one transpose+pad pass per tensor ------
    # (padded dbox columns get logit 0 / label 0; they are masked in-kernel)
    conf_l = jnp.pad(jnp.transpose(conf_data, (0, 2, 1)).astype(jnp.float32),
                     ((0, 0), (0, 0), (0, pad_d))).reshape(B, C, 8, Dp8)
    loc_l = jnp.pad(jnp.transpose(loc_data, (0, 2, 1)).astype(jnp.float32),
                    ((0, 0), (0, 0), (0, pad_d))).reshape(B, 4, 8, Dp8)
    loct_l = jnp.pad(jnp.transpose(loc_t, (0, 2, 1)),
                     ((0, 0), (0, 0), (0, pad_d))).reshape(B, 4, 8, Dp8)
    label_l = jnp.pad(conf_t, ((0, 0), (0, pad_d))).reshape(B, 8, Dp8)

    kernel = functools.partial(_multibox_loss_kernel,
                               negpos_ratio=float(neg_pos),
                               num_dbox=int(D),
                               num_classes=int(C),
                               n_bisect=24)

    out = pl.pallas_call(
        kernel,
        out_shape=jax.ShapeDtypeStruct((B, 8, 128), jnp.float32),
        grid_spec=pltpu.PrefetchScalarGridSpec(
            num_scalar_prefetch=0,
            grid=(B,),
            in_specs=[
                pl.BlockSpec((1, 4, 8, Dp8), lambda b: (b, 0, 0, 0)),  # loc
                pl.BlockSpec((1, C, 8, Dp8), lambda b: (b, 0, 0, 0)),  # conf
                pl.BlockSpec((1, 4, 8, Dp8), lambda b: (b, 0, 0, 0)),  # loc_t
                pl.BlockSpec((1, 8, Dp8), lambda b: (b, 0, 0)),        # labels
            ],
            out_specs=pl.BlockSpec((1, 8, 128), lambda b: (b, 0, 0)),
        ),
        compiler_params=pltpu.CompilerParams(
            dimension_semantics=("parallel",)),
    )(loc_l, conf_l, loct_l, label_l)

    n = jnp.sum(out[:, 2, 0])
    # NOTE: matches torch semantics, which also yields inf/nan when N == 0.
    loss_l = jnp.sum(out[:, 0, 0]) / n
    loss_c = jnp.sum(out[:, 1, 0]) / n
    return loss_l, loss_c


# --------------------------------------------------------------------------
if __name__ == "__main__":
    key = jax.random.PRNGKey(0)
    k1, k2, k3, k4, k5, k6, k7 = jax.random.split(key, 7)

    B, D, C = 2, 512, 21          # small stand-in for (batch, 8732, 21)
    num_obj = 4

    loc_data = 0.1 * jax.random.normal(k1, (B, D, 4), jnp.float32)
    conf_data = jax.random.normal(k2, (B, D, C), jnp.float32)

    # default boxes (cx, cy, w, h)
    d_cxcy = jax.random.uniform(k3, (D, 2), minval=0.05, maxval=0.95)
    d_wh = jax.random.uniform(k4, (D, 2), minval=0.10, maxval=0.40)
    dbox_list = jnp.concatenate([d_cxcy, d_wh], axis=1).astype(jnp.float32)

    # ground-truth targets (B, num_obj, 5) = [xmin, ymin, xmax, ymax, label]
    t_cxcy = jax.random.uniform(k5, (B, num_obj, 2), minval=0.25, maxval=0.75)
    t_wh = jax.random.uniform(k6, (B, num_obj, 2), minval=0.15, maxval=0.40)
    t_lab = jax.random.randint(k7, (B, num_obj, 1), 0, C - 1).astype(jnp.float32)
    targets = jnp.concatenate(
        [t_cxcy - t_wh / 2.0, t_cxcy + t_wh / 2.0, t_lab], axis=-1
    ).astype(jnp.float32)

    loss_l, loss_c = multibox_loss(loc_data, conf_data, dbox_list, targets)
    jax.block_until_ready((loss_l, loss_c))
    print("KERNEL_OK")
</pallas_src>

<mosaic_0001>
module attributes {stable_mosaic.version = 11 : i64} {
  func.func @_multibox_loss_kernel(%arg0: i32, %arg1: memref<1x4x8x128xf32, #tpu.memory_space<vmem>>, %arg2: memref<1x21x8x128xf32, #tpu.memory_space<vmem>>, %arg3: memref<1x4x8x128xf32, #tpu.memory_space<vmem>>, %arg4: memref<1x8x128xi32, #tpu.memory_space<vmem>>, %arg5: memref<1x8x128xf32, #tpu.memory_space<vmem>>) attributes {dimension_semantics = [#tpu.dimension_semantics<parallel>], iteration_bounds = array<i64: 2>, scalar_prefetch = 0 : i64, scratch_operands = 0 : i64, tpu.core_type = #tpu.core_type<tc>, window_params = [{transform_indices = @transform_0, window_bounds = array<i64: 1, 4, 8, 128>}, {transform_indices = @transform_1, window_bounds = array<i64: 1, 21, 8, 128>}, {transform_indices = @transform_2, window_bounds = array<i64: 1, 4, 8, 128>}, {transform_indices = @transform_3, window_bounds = array<i64: 1, 8, 128>}, {transform_indices = @transform_4, window_bounds = array<i64: 1, 8, 128>}]} {
    %c0 = arith.constant 0 : index
    %c0_0 = arith.constant 0 : index
    %c0_1 = arith.constant 0 : index
    %0 = vector.load %arg4[%c0, %c0_0, %c0_1] : memref<1x8x128xi32, #tpu.memory_space<vmem>>, vector<1x8x128xi32>
    %1 = vector.shape_cast %0 : vector<1x8x128xi32> to vector<8x128xi32>
    %c0_i32 = arith.constant 0 : i32
    %2 = vector.broadcast %c0_i32 : i32 to vector<8x128xi32>
    %3 = arith.cmpi sgt, %1, %2 : vector<8x128xi32>
    %4 = arith.extui %3 : vector<8x128xi1> to vector<8x128xi32>
    %5 = arith.sitofp %4 : vector<8x128xi32> to vector<8x128xf32>
    %cst = arith.constant dense<0.000000e+00> : vector<8xf32>
    %6 = vector.multi_reduction <add>, %5, %cst [1] : vector<8x128xf32> to vector<8xf32>
    %7 = vector.shape_cast %6 : vector<8xf32> to vector<8x1xf32>
    %cst_2 = arith.constant dense<0.000000e+00> : vector<1xf32>
    %8 = vector.multi_reduction <add>, %7, %cst_2 [0] : vector<8x1xf32> to vector<1xf32>
    %9 = vector.shape_cast %8 : vector<1xf32> to vector<1x1xf32>
    %c0_3 = arith.constant 0 : index
    %c0_4 = arith.constant 0 : index
    %c0_5 = arith.constant 0 : index
    %c0_6 = arith.constant 0 : index
    %10 = vector.load %arg2[%c0_3, %c0_4, %c0_5, %c0_6] : memref<1x21x8x128xf32, #tpu.memory_space<vmem>>, vector<1x1x8x128xf32>
    %11 = vector.shape_cast %10 : vector<1x1x8x128xf32> to vector<8x128xf32>
    %c0_7 = arith.constant 0 : index
    %c1 = arith.constant 1 : index
    %c0_8 = arith.constant 0 : index
    %c0_9 = arith.constant 0 : index
    %12 = vector.load %arg2[%c0_7, %c1, %c0_8, %c0_9] : memref<1x21x8x128xf32, #tpu.memory_space<vmem>>, vector<1x1x8x128xf32>
    %13 = vector.shape_cast %12 : vector<1x1x8x128xf32> to vector<8x128xf32>
    %14 = arith.maximumf %11, %13 : vector<8x128xf32>
    %c0_10 = arith.constant 0 : index
    %c2 = arith.constant 2 : index
    %c0_11 = arith.constant 0 : index
    %c0_12 = arith.constant 0 : index
    %15 = vector.load %arg2[%c0_10, %c2, %c0_11, %c0_12] : memref<1x21x8x128xf32, #tpu.memory_space<vmem>>, vector<1x1x8x128xf32>
    %16 = vector.shape_cast %15 : vector<1x1x8x128xf32> to vector<8x128xf32>
    %17 = arith.maximumf %14, %16 : vector<8x128xf32>
    %c0_13 = arith.constant 0 : index
    %c3 = arith.constant 3 : index
    %c0_14 = arith.constant 0 : index
    %c0_15 = arith.constant 0 : index
    %18 = vector.load %arg2[%c0_13, %c3, %c0_14, %c0_15] : memref<1x21x8x128xf32, #tpu.memory_space<vmem>>, vector<1x1x8x128xf32>
    %19 = vector.shape_cast %18 : vector<1x1x8x128xf32> to vector<8x128xf32>
    %20 = arith.maximumf %17, %19 : vector<8x128xf32>
    %c0_16 = arith.constant 0 : index
    %c4 = arith.constant 4 : index
    %c0_17 = arith.constant 0 : index
    %c0_18 = arith.constant 0 : index
    %21 = vector.load %arg2[%c0_16, %c4, %c0_17, %c0_18] : memref<1x21x8x128xf32, #tpu.memory_space<vmem>>, vector<1x1x8x128xf32>
    %22 = vector.shape_cast %21 : vector<1x1x8x128xf32> to vector<8x128xf32>
    %23 = arith.maximumf %20, %22 : vector<8x128xf32>
    %c0_19 = arith.constant 0 : index
    %c5 = arith.constant 5 : index
    %c0_20 = arith.constant 0 : index
    %c0_21 = arith.constant 0 : index
    %24 = vector.load %arg2[%c0_19, %c5, %c0_20, %c0_21] : memref<1x21x8x128xf32, #tpu.memory_space<vmem>>, vector<1x1x8x128xf32>
    %25 = vector.shape_cast %24 : vector<1x1x8x128xf32> to vector<8x128xf32>
    %26 = arith.maximumf %23, %25 : vector<8x128xf32>
    %c0_22 = arith.constant 0 : index
    %c6 = arith.constant 6 : index
    %c0_23 = arith.constant 0 : index
    %c0_24 = arith.constant 0 : index
    %27 = vector.load %arg2[%c0_22, %c6, %c0_23, %c0_24] : memref<1x21x8x128xf32, #tpu.memory_space<vmem>>, vector<1x1x8x128xf32>
    %28 = vector.shape_cast %27 : vector<1x1x8x128xf32> to vector<8x128xf32>
    %29 = arith.maximumf %26, %28 : vector<8x128xf32>
    %c0_25 = arith.constant 0 : index
    %c7 = arith.constant 7 : index
    %c0_26 = arith.constant 0 : index
    %c0_27 = arith.constant 0 : index
    %30 = vector.load %arg2[%c0_25, %c7, %c0_26, %c0_27] : memref<1x21x8x128xf32, #tpu.memory_space<vmem>>, vector<1x1x8x128xf32>
    %31 = vector.shape_cast %30 : vector<1x1x8x128xf32> to vector<8x128xf32>
    %32 = arith.maximumf %29, %31 : vector<8x128xf32>
    %c0_28 = arith.constant 0 : index
    %c8 = arith.constant 8 : index
    %c0_29 = arith.constant 0 : index
    %c0_30 = arith.constant 0 : index
    %33 = vector.load %arg2[%c0_28, %c8, %c0_29, %c0_30] : memref<1x21x8x128xf32, #tpu.memory_space<vmem>>, vector<1x1x8x128xf32>
    %34 = vector.shape_cast %33 : vector<1x1x8x128xf32> to vector<8x128xf32>
    %35 = arith.maximumf %32, %34 : vector<8x128xf32>
    %c0_31 = arith.constant 0 : index
    %c9 = arith.constant 9 : index
    %c0_32 = arith.constant 0 : index
    %c0_33 = arith.constant 0 : index
    %36 = vector.load %arg2[%c0_31, %c9, %c0_32, %c0_33] : memref<1x21x8x128xf32, #tpu.memory_space<vmem>>, vector<1x1x8x128xf32>
    %37 = vector.shape_cast %36 : vector<1x1x8x128xf32> to vector<8x128xf32>
    %38 = arith.maximumf %35, %37 : vector<8x128xf32>
    %c0_34 = arith.constant 0 : index
    %c10 = arith.constant 10 : index
    %c0_35 = arith.constant 0 : index
    %c0_36 = arith.constant 0 : index
    %39 = vector.load %arg2[%c0_34, %c10, %c0_35, %c0_36] : memref<1x21x8x128xf32, #tpu.memory_space<vmem>>, vector<1x1x8x128xf32>
    %40 = vector.shape_cast %39 : vector<1x1x8x128xf32> to vector<8x128xf32>
    %41 = arith.maximumf %38, %40 : vector<8x128xf32>
    %c0_37 = arith.constant 0 : index
    %c11 = arith.constant 11 : index
    %c0_38 = arith.constant 0 : index
    %c0_39 = arith.constant 0 : index
    %42 = vector.load %arg2[%c0_37, %c11, %c0_38, %c0_39] : memref<1x21x8x128xf32, #tpu.memory_space<vmem>>, vector<1x1x8x128xf32>
    %43 = vector.shape_cast %42 : vector<1x1x8x128xf32> to vector<8x128xf32>
    %44 = arith.maximumf %41, %43 : vector<8x128xf32>
    %c0_40 = arith.constant 0 : index
    %c12 = arith.constant 12 : index
    %c0_41 = arith.constant 0 : index
    %c0_42 = arith.constant 0 : index
    %45 = vector.load %arg2[%c0_40, %c12, %c0_41, %c0_42] : memref<1x21x8x128xf32, #tpu.memory_space<vmem>>, vector<1x1x8x128xf32>
    %46 = vector.shape_cast %45 : vector<1x1x8x128xf32> to vector<8x128xf32>
    %47 = arith.maximumf %44, %46 : vector<8x128xf32>
    %c0_43 = arith.constant 0 : index
    %c13 = arith.constant 13 : index
    %c0_44 = arith.constant 0 : index
    %c0_45 = arith.constant 0 : index
    %48 = vector.load %arg2[%c0_43, %c13, %c0_44, %c0_45] : memref<1x21x8x128xf32, #tpu.memory_space<vmem>>, vector<1x1x8x128xf32>
    %49 = vector.shape_cast %48 : vector<1x1x8x128xf32> to vector<8x128xf32>
    %50 = arith.maximumf %47, %49 : vector<8x128xf32>
    %c0_46 = arith.constant 0 : index
    %c14 = arith.constant 14 : index
    %c0_47 = arith.constant 0 : index
    %c0_48 = arith.constant 0 : index
    %51 = vector.load %arg2[%c0_46, %c14, %c0_47, %c0_48] : memref<1x21x8x128xf32, #tpu.memory_space<vmem>>, vector<1x1x8x128xf32>
    %52 = vector.shape_cast %51 : vector<1x1x8x128xf32> to vector<8x128xf32>
    %53 = arith.maximumf %50, %52 : vector<8x128xf32>
    %c0_49 = arith.constant 0 : index
    %c15 = arith.constant 15 : index
    %c0_50 = arith.constant 0 : index
    %c0_51 = arith.constant 0 : index
    %54 = vector.load %arg2[%c0_49, %c15, %c0_50, %c0_51] : memref<1x21x8x128xf32, #tpu.memory_space<vmem>>, vector<1x1x8x128xf32>
    %55 = vector.shape_cast %54 : vector<1x1x8x128xf32> to vector<8x128xf32>
    %56 = arith.maximumf %53, %55 : vector<8x128xf32>
    %c0_52 = arith.constant 0 : index
    %c16 = arith.constant 16 : index
    %c0_53 = arith.constant 0 : index
    %c0_54 = arith.constant 0 : index
    %57 = vector.load %arg2[%c0_52, %c16, %c0_53, %c0_54] : memref<1x21x8x128xf32, #tpu.memory_space<vmem>>, vector<1x1x8x128xf32>
    %58 = vector.shape_cast %57 : vector<1x1x8x128xf32> to vector<8x128xf32>
    %59 = arith.maximumf %56, %58 : vector<8x128xf32>
    %c0_55 = arith.constant 0 : index
    %c17 = arith.constant 17 : index
    %c0_56 = arith.constant 0 : index
    %c0_57 = arith.constant 0 : index
    %60 = vector.load %arg2[%c0_55, %c17, %c0_56, %c0_57] : memref<1x21x8x128xf32, #tpu.memory_space<vmem>>, vector<1x1x8x128xf32>
    %61 = vector.shape_cast %60 : vector<1x1x8x128xf32> to vector<8x128xf32>
    %62 = arith.maximumf %59, %61 : vector<8x128xf32>
    %c0_58 = arith.constant 0 : index
    %c18 = arith.constant 18 : index
    %c0_59 = arith.constant 0 : index
    %c0_60 = arith.constant 0 : index
    %63 = vector.load %arg2[%c0_58, %c18, %c0_59, %c0_60] : memref<1x21x8x128xf32, #tpu.memory_space<vmem>>, vector<1x1x8x128xf32>
    %64 = vector.shape_cast %63 : vector<1x1x8x128xf32> to vector<8x128xf32>
    %65 = arith.maximumf %62, %64 : vector<8x128xf32>
    %c0_61 = arith.constant 0 : index
    %c19 = arith.constant 19 : index
    %c0_62 = arith.constant 0 : index
    %c0_63 = arith.constant 0 : index
    %66 = vector.load %arg2[%c0_61, %c19, %c0_62, %c0_63] : memref<1x21x8x128xf32, #tpu.memory_space<vmem>>, vector<1x1x8x128xf32>
    %67 = vector.shape_cast %66 : vector<1x1x8x128xf32> to vector<8x128xf32>
    %68 = arith.maximumf %65, %67 : vector<8x128xf32>
    %c0_64 = arith.constant 0 : index
    %c20 = arith.constant 20 : index
    %c0_65 = arith.constant 0 : index
    %c0_66 = arith.constant 0 : index
    %69 = vector.load %arg2[%c0_64, %c20, %c0_65, %c0_66] : memref<1x21x8x128xf32, #tpu.memory_space<vmem>>, vector<1x1x8x128xf32>
    %70 = vector.shape_cast %69 : vector<1x1x8x128xf32> to vector<8x128xf32>
    %71 = arith.maximumf %68, %70 : vector<8x128xf32>
    %cst_67 = arith.constant 0.000000e+00 : f32
    %72 = vector.broadcast %cst_67 : f32 to vector<8x128xf32>
    %cst_68 = arith.constant 0.000000e+00 : f32
    %73 = vector.broadcast %cst_68 : f32 to vector<8x128xf32>
    %c0_69 = arith.constant 0 : index
    %c0_70 = arith.constant 0 : index
    %c0_71 = arith.constant 0 : index
    %c0_72 = arith.constant 0 : index
    %74 = vector.load %arg2[%c0_69, %c0_70, %c0_71, %c0_72] : memref<1x21x8x128xf32, #tpu.memory_space<vmem>>, vector<1x1x8x128xf32>
    %75 = vector.shape_cast %74 : vector<1x1x8x128xf32> to vector<8x128xf32>
    %76 = arith.subf %75, %71 : vector<8x128xf32>
    %77 = math.exp %76 : vector<8x128xf32>
    %78 = arith.addf %72, %77 : vector<8x128xf32>
    %c0_i32_73 = arith.constant 0 : i32
    %79 = vector.broadcast %c0_i32_73 : i32 to vector<8x128xi32>
    %80 = arith.cmpi eq, %1, %79 : vector<8x128xi32>
    %cst_74 = arith.constant 0.000000e+00 : f32
    %81 = vector.broadcast %cst_74 : f32 to vector<8x128xf32>
    %82 = arith.select %80, %75, %81 : vector<8x128xi1>, vector<8x128xf32>
    %83 = arith.addf %73, %82 : vector<8x128xf32>
    %c0_75 = arith.constant 0 : index
    %c1_76 = arith.constant 1 : index
    %c0_77 = arith.constant 0 : index
    %c0_78 = arith.constant 0 : index
    %84 = vector.load %arg2[%c0_75, %c1_76, %c0_77, %c0_78] : memref<1x21x8x128xf32, #tpu.memory_space<vmem>>, vector<1x1x8x128xf32>
    %85 = vector.shape_cast %84 : vector<1x1x8x128xf32> to vector<8x128xf32>
    %86 = arith.subf %85, %71 : vector<8x128xf32>
    %87 = math.exp %86 : vector<8x128xf32>
    %88 = arith.addf %78, %87 : vector<8x128xf32>
    %c1_i32 = arith.constant 1 : i32
    %89 = vector.broadcast %c1_i32 : i32 to vector<8x128xi32>
    %90 = arith.cmpi eq, %1, %89 : vector<8x128xi32>
    %cst_79 = arith.constant 0.000000e+00 : f32
    %91 = vector.broadcast %cst_79 : f32 to vector<8x128xf32>
    %92 = arith.select %90, %85, %91 : vector<8x128xi1>, vector<8x128xf32>
    %93 = arith.addf %83, %92 : vector<8x128xf32>
    %c0_80 = arith.constant 0 : index
    %c2_81 = arith.constant 2 : index
    %c0_82 = arith.constant 0 : index
    %c0_83 = arith.constant 0 : index
    %94 = vector.load %arg2[%c0_80, %c2_81, %c0_82, %c0_83] : memref<1x21x8x128xf32, #tpu.memory_space<vmem>>, vector<1x1x8x128xf32>
    %95 = vector.shape_cast %94 : vector<1x1x8x128xf32> to vector<8x128xf32>
    %96 = arith.subf %95, %71 : vector<8x128xf32>
    %97 = math.exp %96 : vector<8x128xf32>
    %98 = arith.addf %88, %97 : vector<8x128xf32>
    %c2_i32 = arith.constant 2 : i32
    %99 = vector.broadcast %c2_i32 : i32 to vector<8x128xi32>
    %100 = arith.cmpi eq, %1, %99 : vector<8x128xi32>
    %cst_84 = arith.constant 0.000000e+00 : f32
    %101 = vector.broadcast %cst_84 : f32 to vector<8x128xf32>
    %102 = arith.select %100, %95, %101 : vector<8x128xi1>, vector<8x128xf32>
    %103 = arith.addf %93, %102 : vector<8x128xf32>
    %c0_85 = arith.constant 0 : index
    %c3_86 = arith.constant 3 : index
    %c0_87 = arith.constant 0 : index
    %c0_88 = arith.constant 0 : index
    %104 = vector.load %arg2[%c0_85, %c3_86, %c0_87, %c0_88] : memref<1x21x8x128xf32, #tpu.memory_space<vmem>>, vector<1x1x8x128xf32>
    %105 = vector.shape_cast %104 : vector<1x1x8x128xf32> to vector<8x128xf32>
    %106 = arith.subf %105, %71 : vector<8x128xf32>
    %107 = math.exp %106 : vector<8x128xf32>
    %108 = arith.addf %98, %107 : vector<8x128xf32>
    %c3_i32 = arith.constant 3 : i32
    %109 = vector.broadcast %c3_i32 : i32 to vector<8x128xi32>
    %110 = arith.cmpi eq, %1, %109 : vector<8x128xi32>
    %cst_89 = arith.constant 0.000000e+00 : f32
    %111 = vector.broadcast %cst_89 : f32 to vector<8x128xf32>
    %112 = arith.select %110, %105, %111 : vector<8x128xi1>, vector<8x128xf32>
    %113 = arith.addf %103, %112 : vector<8x128xf32>
    %c0_90 = arith.constant 0 : index
    %c4_91 = arith.constant 4 : index
    %c0_92 = arith.constant 0 : index
    %c0_93 = arith.constant 0 : index
    %114 = vector.load %arg2[%c0_90, %c4_91, %c0_92, %c0_93] : memref<1x21x8x128xf32, #tpu.memory_space<vmem>>, vector<1x1x8x128xf32>
    %115 = vector.shape_cast %114 : vector<1x1x8x128xf32> to vector<8x128xf32>
    %116 = arith.subf %115, %71 : vector<8x128xf32>
    %117 = math.exp %116 : vector<8x128xf32>
    %118 = arith.addf %108, %117 : vector<8x128xf32>
    %c4_i32 = arith.constant 4 : i32
    %119 = vector.broadcast %c4_i32 : i32 to vector<8x128xi32>
    %120 = arith.cmpi eq, %1, %119 : vector<8x128xi32>
    %cst_94 = arith.constant 0.000000e+00 : f32
    %121 = vector.broadcast %cst_94 : f32 to vector<8x128xf32>
    %122 = arith.select %120, %115, %121 : vector<8x128xi1>, vector<8x128xf32>
    %123 = arith.addf %113, %122 : vector<8x128xf32>
    %c0_95 = arith.constant 0 : index
    %c5_96 = arith.constant 5 : index
    %c0_97 = arith.constant 0 : index
    %c0_98 = arith.constant 0 : index
    %124 = vector.load %arg2[%c0_95, %c5_96, %c0_97, %c0_98] : memref<1x21x8x128xf32, #tpu.memory_space<vmem>>, vector<1x1x8x128xf32>
    %125 = vector.shape_cast %124 : vector<1x1x8x128xf32> to vector<8x128xf32>
    %126 = arith.subf %125, %71 : vector<8x128xf32>
    %127 = math.exp %126 : vector<8x128xf32>
    %128 = arith.addf %118, %127 : vector<8x128xf32>
    %c5_i32 = arith.constant 5 : i32
    %129 = vector.broadcast %c5_i32 : i32 to vector<8x128xi32>
    %130 = arith.cmpi eq, %1, %129 : vector<8x128xi32>
    %cst_99 = arith.constant 0.000000e+00 : f32
    %131 = vector.broadcast %cst_99 : f32 to vector<8x128xf32>
    %132 = arith.select %130, %125, %131 : vector<8x128xi1>, vector<8x128xf32>
    %133 = arith.addf %123, %132 : vector<8x128xf32>
    %c0_100 = arith.constant 0 : index
    %c6_101 = arith.constant 6 : index
    %c0_102 = arith.constant 0 : index
    %c0_103 = arith.constant 0 : index
    %134 = vector.load %arg2[%c0_100, %c6_101, %c0_102, %c0_103] : memref<1x21x8x128xf32, #tpu.memory_space<vmem>>, vector<1x1x8x128xf32>
    %135 = vector.shape_cast %134 : vector<1x1x8x128xf32> to vector<8x128xf32>
    %136 = arith.subf %135, %71 : vector<8x128xf32>
    %137 = math.exp %136 : vector<8x128xf32>
    %138 = arith.addf %128, %137 : vector<8x128xf32>
    %c6_i32 = arith.constant 6 : i32
    %139 = vector.broadcast %c6_i32 : i32 to vector<8x128xi32>
    %140 = arith.cmpi eq, %1, %139 : vector<8x128xi32>
    %cst_104 = arith.constant 0.000000e+00 : f32
    %141 = vector.broadcast %cst_104 : f32 to vector<8x128xf32>
    %142 = arith.select %140, %135, %141 : vector<8x128xi1>, vector<8x128xf32>
    %143 = arith.addf %133, %142 : vector<8x128xf32>
    %c0_105 = arith.constant 0 : index
    %c7_106 = arith.constant 7 : index
    %c0_107 = arith.constant 0 : index
    %c0_108 = arith.constant 0 : index
    %144 = vector.load %arg2[%c0_105, %c7_106, %c0_107, %c0_108] : memref<1x21x8x128xf32, #tpu.memory_space<vmem>>, vector<1x1x8x128xf32>
    %145 = vector.shape_cast %144 : vector<1x1x8x128xf32> to vector<8x128xf32>
    %146 = arith.subf %145, %71 : vector<8x128xf32>
    %147 = math.exp %146 : vector<8x128xf32>
    %148 = arith.addf %138, %147 : vector<8x128xf32>
    %c7_i32 = arith.constant 7 : i32
    %149 = vector.broadcast %c7_i32 : i32 to vector<8x128xi32>
    %150 = arith.cmpi eq, %1, %149 : vector<8x128xi32>
    %cst_109 = arith.constant 0.000000e+00 : f32
    %151 = vector.broadcast %cst_109 : f32 to vector<8x128xf32>
    %152 = arith.select %150, %145, %151 : vector<8x128xi1>, vector<8x128xf32>
    %153 = arith.addf %143, %152 : vector<8x128xf32>
    %c0_110 = arith.constant 0 : index
    %c8_111 = arith.constant 8 : index
    %c0_112 = arith.constant 0 : index
    %c0_113 = arith.constant 0 : index
    %154 = vector.load %arg2[%c0_110, %c8_111, %c0_112, %c0_113] : memref<1x21x8x128xf32, #tpu.memory_space<vmem>>, vector<1x1x8x128xf32>
    %155 = vector.shape_cast %154 : vector<1x1x8x128xf32> to vector<8x128xf32>
    %156 = arith.subf %155, %71 : vector<8x128xf32>
    %157 = math.exp %156 : vector<8x128xf32>
    %158 = arith.addf %148, %157 : vector<8x128xf32>
    %c8_i32 = arith.constant 8 : i32
    %159 = vector.broadcast %c8_i32 : i32 to vector<8x128xi32>
    %160 = arith.cmpi eq, %1, %159 : vector<8x128xi32>
    %cst_114 = arith.constant 0.000000e+00 : f32
    %161 = vector.broadcast %cst_114 : f32 to vector<8x128xf32>
    %162 = arith.select %160, %155, %161 : vector<8x128xi1>, vector<8x128xf32>
    %163 = arith.addf %153, %162 : vector<8x128xf32>
    %c0_115 = arith.constant 0 : index
    %c9_116 = arith.constant 9 : index
    %c0_117 = arith.constant 0 : index
    %c0_118 = arith.constant 0 : index
    %164 = vector.load %arg2[%c0_115, %c9_116, %c0_117, %c0_118] : memref<1x21x8x128xf32, #tpu.memory_space<vmem>>, vector<1x1x8x128xf32>
    %165 = vector.shape_cast %164 : vector<1x1x8x128xf32> to vector<8x128xf32>
    %166 = arith.subf %165, %71 : vector<8x128xf32>
    %167 = math.exp %166 : vector<8x128xf32>
    %168 = arith.addf %158, %167 : vector<8x128xf32>
    %c9_i32 = arith.constant 9 : i32
    %169 = vector.broadcast %c9_i32 : i32 to vector<8x128xi32>
    %170 = arith.cmpi eq, %1, %169 : vector<8x128xi32>
    %cst_119 = arith.constant 0.000000e+00 : f32
    %171 = vector.broadcast %cst_119 : f32 to vector<8x128xf32>
    %172 = arith.select %170, %165, %171 : vector<8x128xi1>, vector<8x128xf32>
    %173 = arith.addf %163, %172 : vector<8x128xf32>
    %c0_120 = arith.constant 0 : index
    %c10_121 = arith.constant 10 : index
    %c0_122 = arith.constant 0 : index
    %c0_123 = arith.constant 0 : index
    %174 = vector.load %arg2[%c0_120, %c10_121, %c0_122, %c0_123] : memref<1x21x8x128xf32, #tpu.memory_space<vmem>>, vector<1x1x8x128xf32>
    %175 = vector.shape_cast %174 : vector<1x1x8x128xf32> to vector<8x128xf32>
    %176 = arith.subf %175, %71 : vector<8x128xf32>
    %177 = math.exp %176 : vector<8x128xf32>
    %178 = arith.addf %168, %177 : vector<8x128xf32>
    %c10_i32 = arith.constant 10 : i32
    %179 = vector.broadcast %c10_i32 : i32 to vector<8x128xi32>
    %180 = arith.cmpi eq, %1, %179 : vector<8x128xi32>
    %cst_124 = arith.constant 0.000000e+00 : f32
    %181 = vector.broadcast %cst_124 : f32 to vector<8x128xf32>
    %182 = arith.select %180, %175, %181 : vector<8x128xi1>, vector<8x128xf32>
    %183 = arith.addf %173, %182 : vector<8x128xf32>
    %c0_125 = arith.constant 0 : index
    %c11_126 = arith.constant 11 : index
    %c0_127 = arith.constant 0 : index
    %c0_128 = arith.constant 0 : index
    %184 = vector.load %arg2[%c0_125, %c11_126, %c0_127, %c0_128] : memref<1x21x8x128xf32, #tpu.memory_space<vmem>>, vector<1x1x8x128xf32>
    %185 = vector.shape_cast %184 : vector<1x1x8x128xf32> to vector<8x128xf32>
    %186 = arith.subf %185, %71 : vector<8x128xf32>
    %187 = math.exp %186 : vector<8x128xf32>
    %188 = arith.addf %178, %187 : vector<8x128xf32>
    %c11_i32 = arith.constant 11 : i32
    %189 = vector.broadcast %c11_i32 : i32 to vector<8x128xi32>
    %190 = arith.cmpi eq, %1, %189 : vector<8x128xi32>
    %cst_129 = arith.constant 0.000000e+00 : f32
    %191 = vector.broadcast %cst_129 : f32 to vector<8x128xf32>
    %192 = arith.select %190, %185, %191 : vector<8x128xi1>, vector<8x128xf32>
    %193 = arith.addf %183, %192 : vector<8x128xf32>
    %c0_130 = arith.constant 0 : index
    %c12_131 = arith.constant 12 : index
    %c0_132 = arith.constant 0 : index
    %c0_133 = arith.constant 0 : index
    %194 = vector.load %arg2[%c0_130, %c12_131, %c0_132, %c0_133] : memref<1x21x8x128xf32, #tpu.memory_space<vmem>>, vector<1x1x8x128xf32>
    %195 = vector.shape_cast %194 : vector<1x1x8x128xf32> to vector<8x128xf32>
    %196 = arith.subf %195, %71 : vector<8x128xf32>
    %197 = math.exp %196 : vector<8x128xf32>
    %198 = arith.addf %188, %197 : vector<8x128xf32>
    %c12_i32 = arith.constant 12 : i32
    %199 = vector.broadcast %c12_i32 : i32 to vector<8x128xi32>
    %200 = arith.cmpi eq, %1, %199 : vector<8x128xi32>
    %cst_134 = arith.constant 0.000000e+00 : f32
    %201 = vector.broadcast %cst_134 : f32 to vector<8x128xf32>
    %202 = arith.select %200, %195, %201 : vector<8x128xi1>, vector<8x128xf32>
    %203 = arith.addf %193, %202 : vector<8x128xf32>
    %c0_135 = arith.constant 0 : index
    %c13_136 = arith.constant 13 : index
    %c0_137 = arith.constant 0 : index
    %c0_138 = arith.constant 0 : index
    %204 = vector.load %arg2[%c0_135, %c13_136, %c0_137, %c0_138] : memref<1x21x8x128xf32, #tpu.memory_space<vmem>>, vector<1x1x8x128xf32>
    %205 = vector.shape_cast %204 : vector<1x1x8x128xf32> to vector<8x128xf32>
    %206 = arith.subf %205, %71 : vector<8x128xf32>
    %207 = math.exp %206 : vector<8x128xf32>
    %208 = arith.addf %198, %207 : vector<8x128xf32>
    %c13_i32 = arith.constant 13 : i32
    %209 = vector.broadcast %c13_i32 : i32 to vector<8x128xi32>
    %210 = arith.cmpi eq, %1, %209 : vector<8x128xi32>
    %cst_139 = arith.constant 0.000000e+00 : f32
    %211 = vector.broadcast %cst_139 : f32 to vector<8x128xf32>
    %212 = arith.select %210, %205, %211 : vector<8x128xi1>, vector<8x128xf32>
    %213 = arith.addf %203, %212 : vector<8x128xf32>
    %c0_140 = arith.constant 0 : index
    %c14_141 = arith.constant 14 : index
    %c0_142 = arith.constant 0 : index
    %c0_143 = arith.constant 0 : index
    %214 = vector.load %arg2[%c0_140, %c14_141, %c0_142, %c0_143] : memref<1x21x8x128xf32, #tpu.memory_space<vmem>>, vector<1x1x8x128xf32>
    %215 = vector.shape_cast %214 : vector<1x1x8x128xf32> to vector<8x128xf32>
    %216 = arith.subf %215, %71 : vector<8x128xf32>
    %217 = math.exp %216 : vector<8x128xf32>
    %218 = arith.addf %208, %217 : vector<8x128xf32>
    %c14_i32 = arith.constant 14 : i32
    %219 = vector.broadcast %c14_i32 : i32 to vector<8x128xi32>
    %220 = arith.cmpi eq, %1, %219 : vector<8x128xi32>
    %cst_144 = arith.constant 0.000000e+00 : f32
    %221 = vector.broadcast %cst_144 : f32 to vector<8x128xf32>
    %222 = arith.select %220, %215, %221 : vector<8x128xi1>, vector<8x128xf32>
    %223 = arith.addf %213, %222 : vector<8x128xf32>
    %c0_145 = arith.constant 0 : index
    %c15_146 = arith.constant 15 : index
    %c0_147 = arith.constant 0 : index
    %c0_148 = arith.constant 0 : index
    %224 = vector.load %arg2[%c0_145, %c15_146, %c0_147, %c0_148] : memref<1x21x8x128xf32, #tpu.memory_space<vmem>>, vector<1x1x8x128xf32>
    %225 = vector.shape_cast %224 : vector<1x1x8x128xf32> to vector<8x128xf32>
    %226 = arith.subf %225, %71 : vector<8x128xf32>
    %227 = math.exp %226 : vector<8x128xf32>
    %228 = arith.addf %218, %227 : vector<8x128xf32>
    %c15_i32 = arith.constant 15 : i32
    %229 = vector.broadcast %c15_i32 : i32 to vector<8x128xi32>
    %230 = arith.cmpi eq, %1, %229 : vector<8x128xi32>
    %cst_149 = arith.constant 0.000000e+00 : f32
    %231 = vector.broadcast %cst_149 : f32 to vector<8x128xf32>
    %232 = arith.select %230, %225, %231 : vector<8x128xi1>, vector<8x128xf32>
    %233 = arith.addf %223, %232 : vector<8x128xf32>
    %c0_150 = arith.constant 0 : index
    %c16_151 = arith.constant 16 : index
    %c0_152 = arith.constant 0 : index
    %c0_153 = arith.constant 0 : index
    %234 = vector.load %arg2[%c0_150, %c16_151, %c0_152, %c0_153] : memref<1x21x8x128xf32, #tpu.memory_space<vmem>>, vector<1x1x8x128xf32>
    %235 = vector.shape_cast %234 : vector<1x1x8x128xf32> to vector<8x128xf32>
    %236 = arith.subf %235, %71 : vector<8x128xf32>
    %237 = math.exp %236 : vector<8x128xf32>
    %238 = arith.addf %228, %237 : vector<8x128xf32>
    %c16_i32 = arith.constant 16 : i32
    %239 = vector.broadcast %c16_i32 : i32 to vector<8x128xi32>
    %240 = arith.cmpi eq, %1, %239 : vector<8x128xi32>
    %cst_154 = arith.constant 0.000000e+00 : f32
    %241 = vector.broadcast %cst_154 : f32 to vector<8x128xf32>
    %242 = arith.select %240, %235, %241 : vector<8x128xi1>, vector<8x128xf32>
    %243 = arith.addf %233, %242 : vector<8x128xf32>
    %c0_155 = arith.constant 0 : index
    %c17_156 = arith.constant 17 : index
    %c0_157 = arith.constant 0 : index
    %c0_158 = arith.constant 0 : index
    %244 = vector.load %arg2[%c0_155, %c17_156, %c0_157, %c0_158] : memref<1x21x8x128xf32, #tpu.memory_space<vmem>>, vector<1x1x8x128xf32>
    %245 = vector.shape_cast %244 : vector<1x1x8x128xf32> to vector<8x128xf32>
    %246 = arith.subf %245, %71 : vector<8x128xf32>
    %247 = math.exp %246 : vector<8x128xf32>
    %248 = arith.addf %238, %247 : vector<8x128xf32>
    %c17_i32 = arith.constant 17 : i32
    %249 = vector.broadcast %c17_i32 : i32 to vector<8x128xi32>
    %250 = arith.cmpi eq, %1, %249 : vector<8x128xi32>
    %cst_159 = arith.constant 0.000000e+00 : f32
    %251 = vector.broadcast %cst_159 : f32 to vector<8x128xf32>
    %252 = arith.select %250, %245, %251 : vector<8x128xi1>, vector<8x128xf32>
    %253 = arith.addf %243, %252 : vector<8x128xf32>
    %c0_160 = arith.constant 0 : index
    %c18_161 = arith.constant 18 : index
    %c0_162 = arith.constant 0 : index
    %c0_163 = arith.constant 0 : index
    %254 = vector.load %arg2[%c0_160, %c18_161, %c0_162, %c0_163] : memref<1x21x8x128xf32, #tpu.memory_space<vmem>>, vector<1x1x8x128xf32>
    %255 = vector.shape_cast %254 : vector<1x1x8x128xf32> to vector<8x128xf32>
    %256 = arith.subf %255, %71 : vector<8x128xf32>
    %257 = math.exp %256 : vector<8x128xf32>
    %258 = arith.addf %248, %257 : vector<8x128xf32>
    %c18_i32 = arith.constant 18 : i32
    %259 = vector.broadcast %c18_i32 : i32 to vector<8x128xi32>
    %260 = arith.cmpi eq, %1, %259 : vector<8x128xi32>
    %cst_164 = arith.constant 0.000000e+00 : f32
    %261 = vector.broadcast %cst_164 : f32 to vector<8x128xf32>
    %262 = arith.select %260, %255, %261 : vector<8x128xi1>, vector<8x128xf32>
    %263 = arith.addf %253, %262 : vector<8x128xf32>
    %c0_165 = arith.constant 0 : index
    %c19_166 = arith.constant 19 : index
    %c0_167 = arith.constant 0 : index
    %c0_168 = arith.constant 0 : index
    %264 = vector.load %arg2[%c0_165, %c19_166, %c0_167, %c0_168] : memref<1x21x8x128xf32, #tpu.memory_space<vmem>>, vector<1x1x8x128xf32>
    %265 = vector.shape_cast %264 : vector<1x1x8x128xf32> to vector<8x128xf32>
    %266 = arith.subf %265, %71 : vector<8x128xf32>
    %267 = math.exp %266 : vector<8x128xf32>
    %268 = arith.addf %258, %267 : vector<8x128xf32>
    %c19_i32 = arith.constant 19 : i32
    %269 = vector.broadcast %c19_i32 : i32 to vector<8x128xi32>
    %270 = arith.cmpi eq, %1, %269 : vector<8x128xi32>
    %cst_169 = arith.constant 0.000000e+00 : f32
    %271 = vector.broadcast %cst_169 : f32 to vector<8x128xf32>
    %272 = arith.select %270, %265, %271 : vector<8x128xi1>, vector<8x128xf32>
    %273 = arith.addf %263, %272 : vector<8x128xf32>
    %c0_170 = arith.constant 0 : index
    %c20_171 = arith.constant 20 : index
    %c0_172 = arith.constant 0 : index
    %c0_173 = arith.constant 0 : index
    %274 = vector.load %arg2[%c0_170, %c20_171, %c0_172, %c0_173] : memref<1x21x8x128xf32, #tpu.memory_space<vmem>>, vector<1x1x8x128xf32>
    %275 = vector.shape_cast %274 : vector<1x1x8x128xf32> to vector<8x128xf32>
    %276 = arith.subf %275, %71 : vector<8x128xf32>
    %277 = math.exp %276 : vector<8x128xf32>
    %278 = arith.addf %268, %277 : vector<8x128xf32>
    %c20_i32 = arith.constant 20 : i32
    %279 = vector.broadcast %c20_i32 : i32 to vector<8x128xi32>
    %280 = arith.cmpi eq, %1, %279 : vector<8x128xi32>
    %cst_174 = arith.constant 0.000000e+00 : f32
    %281 = vector.broadcast %cst_174 : f32 to vector<8x128xf32>
    %282 = arith.select %280, %275, %281 : vector<8x128xi1>, vector<8x128xf32>
    %283 = arith.addf %273, %282 : vector<8x128xf32>
    %284 = math.log %278 : vector<8x128xf32>
    %285 = arith.addf %71, %284 : vector<8x128xf32>
    %286 = arith.subf %285, %283 : vector<8x128xf32>
    %cst_175 = arith.constant 0.000000e+00 : f32
    %287 = vector.broadcast %cst_175 : f32 to vector<8x128xf32>
    %c0_176 = arith.constant 0 : index
    %c0_177 = arith.constant 0 : index
    %c0_178 = arith.constant 0 : index
    %c0_179 = arith.constant 0 : index
    %288 = vector.load %arg1[%c0_176, %c0_177, %c0_178, %c0_179] : memref<1x4x8x128xf32, #tpu.memory_space<vmem>>, vector<1x1x8x128xf32>
    %289 = vector.shape_cast %288 : vector<1x1x8x128xf32> to vector<8x128xf32>
    %c0_180 = arith.constant 0 : index
    %c0_181 = arith.constant 0 : index
    %c0_182 = arith.constant 0 : index
    %c0_183 = arith.constant 0 : index
    %290 = vector.load %arg3[%c0_180, %c0_181, %c0_182, %c0_183] : memref<1x4x8x128xf32, #tpu.memory_space<vmem>>, vector<1x1x8x128xf32>
    %291 = vector.shape_cast %290 : vector<1x1x8x128xf32> to vector<8x128xf32>
    %292 = arith.subf %289, %291 : vector<8x128xf32>
    %293 = math.absf %292 : vector<8x128xf32>
    %cst_184 = arith.constant 1.000000e+00 : f32
    %294 = vector.broadcast %cst_184 : f32 to vector<8x128xf32>
    %295 = arith.cmpf olt, %293, %294 : vector<8x128xf32>
    %cst_185 = arith.constant 5.000000e-01 : f32
    %296 = vector.broadcast %cst_185 : f32 to vector<8x128xf32>
    %297 = arith.mulf %296, %292 : vector<8x128xf32>
    %298 = arith.mulf %297, %292 : vector<8x128xf32>
    %cst_186 = arith.constant 5.000000e-01 : f32
    %299 = vector.broadcast %cst_186 : f32 to vector<8x128xf32>
    %300 = arith.subf %293, %299 : vector<8x128xf32>
    %301 = arith.select %295, %298, %300 : vector<8x128xi1>, vector<8x128xf32>
    %302 = arith.addf %287, %301 : vector<8x128xf32>
    %c0_187 = arith.constant 0 : index
    %c1_188 = arith.constant 1 : index
    %c0_189 = arith.constant 0 : index
    %c0_190 = arith.constant 0 : index
    %303 = vector.load %arg1[%c0_187, %c1_188, %c0_189, %c0_190] : memref<1x4x8x128xf32, #tpu.memory_space<vmem>>, vector<1x1x8x128xf32>
    %304 = vector.shape_cast %303 : vector<1x1x8x128xf32> to vector<8x128xf32>
    %c0_191 = arith.constant 0 : index
    %c1_192 = arith.constant 1 : index
    %c0_193 = arith.constant 0 : index
    %c0_194 = arith.constant 0 : index
    %305 = vector.load %arg3[%c0_191, %c1_192, %c0_193, %c0_194] : memref<1x4x8x128xf32, #tpu.memory_space<vmem>>, vector<1x1x8x128xf32>
    %306 = vector.shape_cast %305 : vector<1x1x8x128xf32> to vector<8x128xf32>
    %307 = arith.subf %304, %306 : vector<8x128xf32>
    %308 = math.absf %307 : vector<8x128xf32>
    %cst_195 = arith.constant 1.000000e+00 : f32
    %309 = vector.broadcast %cst_195 : f32 to vector<8x128xf32>
    %310 = arith.cmpf olt, %308, %309 : vector<8x128xf32>
    %cst_196 = arith.constant 5.000000e-01 : f32
    %311 = vector.broadcast %cst_196 : f32 to vector<8x128xf32>
    %312 = arith.mulf %311, %307 : vector<8x128xf32>
    %313 = arith.mulf %312, %307 : vector<8x128xf32>
    %cst_197 = arith.constant 5.000000e-01 : f32
    %314 = vector.broadcast %cst_197 : f32 to vector<8x128xf32>
    %315 = arith.subf %308, %314 : vector<8x128xf32>
    %316 = arith.select %310, %313, %315 : vector<8x128xi1>, vector<8x128xf32>
    %317 = arith.addf %302, %316 : vector<8x128xf32>
    %c0_198 = arith.constant 0 : index
    %c2_199 = arith.constant 2 : index
    %c0_200 = arith.constant 0 : index
    %c0_201 = arith.constant 0 : index
    %318 = vector.load %arg1[%c0_198, %c2_199, %c0_200, %c0_201] : memref<1x4x8x128xf32, #tpu.memory_space<vmem>>, vector<1x1x8x128xf32>
    %319 = vector.shape_cast %318 : vector<1x1x8x128xf32> to vector<8x128xf32>
    %c0_202 = arith.constant 0 : index
    %c2_203 = arith.constant 2 : index
    %c0_204 = arith.constant 0 : index
    %c0_205 = arith.constant 0 : index
    %320 = vector.load %arg3[%c0_202, %c2_203, %c0_204, %c0_205] : memref<1x4x8x128xf32, #tpu.memory_space<vmem>>, vector<1x1x8x128xf32>
    %321 = vector.shape_cast %320 : vector<1x1x8x128xf32> to vector<8x128xf32>
    %322 = arith.subf %319, %321 : vector<8x128xf32>
    %323 = math.absf %322 : vector<8x128xf32>
    %cst_206 = arith.constant 1.000000e+00 : f32
    %324 = vector.broadcast %cst_206 : f32 to vector<8x128xf32>
    %325 = arith.cmpf olt, %323, %324 : vector<8x128xf32>
    %cst_207 = arith.constant 5.000000e-01 : f32
    %326 = vector.broadcast %cst_207 : f32 to vector<8x128xf32>
    %327 = arith.mulf %326, %322 : vector<8x128xf32>
    %328 = arith.mulf %327, %322 : vector<8x128xf32>
    %cst_208 = arith.constant 5.000000e-01 : f32
    %329 = vector.broadcast %cst_208 : f32 to vector<8x128xf32>
    %330 = arith.subf %323, %329 : vector<8x128xf32>
    %331 = arith.select %325, %328, %330 : vector<8x128xi1>, vector<8x128xf32>
    %332 = arith.addf %317, %331 : vector<8x128xf32>
    %c0_209 = arith.constant 0 : index
    %c3_210 = arith.constant 3 : index
    %c0_211 = arith.constant 0 : index
    %c0_212 = arith.constant 0 : index
    %333 = vector.load %arg1[%c0_209, %c3_210, %c0_211, %c0_212] : memref<1x4x8x128xf32, #tpu.memory_space<vmem>>, vector<1x1x8x128xf32>
    %334 = vector.shape_cast %333 : vector<1x1x8x128xf32> to vector<8x128xf32>
    %c0_213 = arith.constant 0 : index
    %c3_214 = arith.constant 3 : index
    %c0_215 = arith.constant 0 : index
    %c0_216 = arith.constant 0 : index
    %335 = vector.load %arg3[%c0_213, %c3_214, %c0_215, %c0_216] : memref<1x4x8x128xf32, #tpu.memory_space<vmem>>, vector<1x1x8x128xf32>
    %336 = vector.shape_cast %335 : vector<1x1x8x128xf32> to vector<8x128xf32>
    %337 = arith.subf %334, %336 : vector<8x128xf32>
    %338 = math.absf %337 : vector<8x128xf32>
    %cst_217 = arith.constant 1.000000e+00 : f32
    %339 = vector.broadcast %cst_217 : f32 to vector<8x128xf32>
    %340 = arith.cmpf olt, %338, %339 : vector<8x128xf32>
    %cst_218 = arith.constant 5.000000e-01 : f32
    %341 = vector.broadcast %cst_218 : f32 to vector<8x128xf32>
    %342 = arith.mulf %341, %337 : vector<8x128xf32>
    %343 = arith.mulf %342, %337 : vector<8x128xf32>
    %cst_219 = arith.constant 5.000000e-01 : f32
    %344 = vector.broadcast %cst_219 : f32 to vector<8x128xf32>
    %345 = arith.subf %338, %344 : vector<8x128xf32>
    %346 = arith.select %340, %343, %345 : vector<8x128xi1>, vector<8x128xf32>
    %347 = arith.addf %332, %346 : vector<8x128xf32>
    %348 = arith.mulf %347, %5 : vector<8x128xf32>
    %cst_220 = arith.constant dense<0.000000e+00> : vector<8xf32>
    %349 = vector.multi_reduction <add>, %348, %cst_220 [1] : vector<8x128xf32> to vector<8xf32>
    %350 = vector.shape_cast %349 : vector<8xf32> to vector<8x1xf32>
    %cst_221 = arith.constant dense<0.000000e+00> : vector<1xf32>
    %351 = vector.multi_reduction <add>, %350, %cst_221 [0] : vector<8x1xf32> to vector<1xf32>
    %352 = vector.shape_cast %351 : vector<1xf32> to vector<1x1xf32>
    %353 = tpu.iota {dimensions = array<i32: 0>} : vector<8x128xi32>
    %354 = tpu.iota {dimensions = array<i32: 1>} : vector<8x128xi32>
    %c128_i32 = arith.constant 128 : i32
    %355 = vector.broadcast %c128_i32 : i32 to vector<8x128xi32>
    %356 = arith.muli %353, %355 : vector<8x128xi32>
    %357 = arith.addi %356, %354 : vector<8x128xi32>
    %c512_i32 = arith.constant 512 : i32
    %358 = vector.broadcast %c512_i32 : i32 to vector<8x128xi32>
    %359 = arith.cmpi slt, %357, %358 : vector<8x128xi32>
    %cst_222 = arith.constant dense<true> : vector<8x128xi1>
    %360 = arith.xori %3, %cst_222 : vector<8x128xi1>
    %361 = arith.andi %359, %360 : vector<8x128xi1>
    %cst_223 = arith.constant 0.000000e+00 : f32
    %362 = vector.broadcast %cst_223 : f32 to vector<8x128xf32>
    %363 = arith.select %361, %286, %362 : vector<8x128xi1>, vector<8x128xf32>
    %cst_224 = arith.constant 3.000000e+00 : f32
    %364 = vector.broadcast %cst_224 : f32 to vector<1x1xf32>
    %365 = arith.mulf %9, %364 : vector<1x1xf32>
    %cst_225 = arith.constant 5.120000e+02 : f32
    %366 = vector.broadcast %cst_225 : f32 to vector<1x1xf32>
    %367 = arith.minimumf %365, %366 : vector<1x1xf32>
    %cst_226 = arith.constant -1.000000e+00 : f32
    %368 = vector.broadcast %cst_226 : f32 to vector<1x1xf32>
    %cst_227 = arith.constant dense<0xFF800000> : vector<8xf32>
    %369 = vector.multi_reduction <maximumf>, %363, %cst_227 [1] : vector<8x128xf32> to vector<8xf32>
    %370 = vector.shape_cast %369 : vector<8xf32> to vector<8x1xf32>
    %cst_228 = arith.constant dense<0xFF800000> : vector<1xf32>
    %371 = vector.multi_reduction <maximumf>, %370, %cst_228 [0] : vector<8x1xf32> to vector<1xf32>
    %372 = vector.shape_cast %371 : vector<1xf32> to vector<1x1xf32>
    %c0_i32_229 = arith.constant 0 : i32
    %373 = arith.addf %368, %372 : vector<1x1xf32>
    %cst_230 = arith.constant 5.000000e-01 : f32
    %374 = vector.broadcast %cst_230 : f32 to vector<1x1xf32>
    %375 = arith.mulf %374, %373 : vector<1x1xf32>
    %376 = vector.broadcast %375 : vector<1x1xf32> to vector<8x128xf32>
    %377 = arith.cmpf ogt, %363, %376 : vector<8x128xf32>
    %378 = arith.extui %377 : vector<8x128xi1> to vector<8x128xi32>
    %379 = arith.sitofp %378 : vector<8x128xi32> to vector<8x128xf32>
    %cst_231 = arith.constant dense<0.000000e+00> : vector<8xf32>
    %380 = vector.multi_reduction <add>, %379, %cst_231 [1] : vector<8x128xf32> to vector<8xf32>
    %381 = vector.shape_cast %380 : vector<8xf32> to vector<8x1xf32>
    %cst_232 = arith.constant dense<0.000000e+00> : vector<1xf32>
    %382 = vector.multi_reduction <add>, %381, %cst_232 [0] : vector<8x1xf32> to vector<1xf32>
    %383 = vector.shape_cast %382 : vector<1xf32> to vector<1x1xf32>
    %384 = arith.cmpf oge, %383, %367 : vector<1x1xf32>
    %385 = arith.select %384, %375, %368 : vector<1x1xi1>, vector<1x1xf32>
    %386 = arith.select %384, %372, %375 : vector<1x1xi1>, vector<1x1xf32>
    %c1_i32_233 = arith.constant 1 : i32
    %387 = arith.addf %385, %386 : vector<1x1xf32>
    %cst_234 = arith.constant 5.000000e-01 : f32
    %388 = vector.broadcast %cst_234 : f32 to vector<1x1xf32>
    %389 = arith.mulf %388, %387 : vector<1x1xf32>
    %390 = vector.broadcast %389 : vector<1x1xf32> to vector<8x128xf32>
    %391 = arith.cmpf ogt, %363, %390 : vector<8x128xf32>
    %392 = arith.extui %391 : vector<8x128xi1> to vector<8x128xi32>
    %393 = arith.sitofp %392 : vector<8x128xi32> to vector<8x128xf32>
    %cst_235 = arith.constant dense<0.000000e+00> : vector<8xf32>
    %394 = vector.multi_reduction <add>, %393, %cst_235 [1] : vector<8x128xf32> to vector<8xf32>
    %395 = vector.shape_cast %394 : vector<8xf32> to vector<8x1xf32>
    %cst_236 = arith.constant dense<0.000000e+00> : vector<1xf32>
    %396 = vector.multi_reduction <add>, %395, %cst_236 [0] : vector<8x1xf32> to vector<1xf32>
    %397 = vector.shape_cast %396 : vector<1xf32> to vector<1x1xf32>
    %398 = arith.cmpf oge, %397, %367 : vector<1x1xf32>
    %399 = arith.select %398, %389, %385 : vector<1x1xi1>, vector<1x1xf32>
    %400 = arith.select %398, %386, %389 : vector<1x1xi1>, vector<1x1xf32>
    %c2_i32_237 = arith.constant 2 : i32
    %401 = arith.addf %399, %400 : vector<1x1xf32>
    %cst_238 = arith.constant 5.000000e-01 : f32
    %402 = vector.broadcast %cst_238 : f32 to vector<1x1xf32>
    %403 = arith.mulf %402, %401 : vector<1x1xf32>
    %404 = vector.broadcast %403 : vector<1x1xf32> to vector<8x128xf32>
    %405 = arith.cmpf ogt, %363, %404 : vector<8x128xf32>
    %406 = arith.extui %405 : vector<8x128xi1> to vector<8x128xi32>
    %407 = arith.sitofp %406 : vector<8x128xi32> to vector<8x128xf32>
    %cst_239 = arith.constant dense<0.000000e+00> : vector<8xf32>
    %408 = vector.multi_reduction <add>, %407, %cst_239 [1] : vector<8x128xf32> to vector<8xf32>
    %409 = vector.shape_cast %408 : vector<8xf32> to vector<8x1xf32>
    %cst_240 = arith.constant dense<0.000000e+00> : vector<1xf32>
    %410 = vector.multi_reduction <add>, %409, %cst_240 [0] : vector<8x1xf32> to vector<1xf32>
    %411 = vector.shape_cast %410 : vector<1xf32> to vector<1x1xf32>
    %412 = arith.cmpf oge, %411, %367 : vector<1x1xf32>
    %413 = arith.select %412, %403, %399 : vector<1x1xi1>, vector<1x1xf32>
    %414 = arith.select %412, %400, %403 : vector<1x1xi1>, vector<1x1xf32>
    %c3_i32_241 = arith.constant 3 : i32
    %415 = arith.addf %413, %414 : vector<1x1xf32>
    %cst_242 = arith.constant 5.000000e-01 : f32
    %416 = vector.broadcast %cst_242 : f32 to vector<1x1xf32>
    %417 = arith.mulf %416, %415 : vector<1x1xf32>
    %418 = vector.broadcast %417 : vector<1x1xf32> to vector<8x128xf32>
    %419 = arith.cmpf ogt, %363, %418 : vector<8x128xf32>
    %420 = arith.extui %419 : vector<8x128xi1> to vector<8x128xi32>
    %421 = arith.sitofp %420 : vector<8x128xi32> to vector<8x128xf32>
    %cst_243 = arith.constant dense<0.000000e+00> : vector<8xf32>
    %422 = vector.multi_reduction <add>, %421, %cst_243 [1] : vector<8x128xf32> to vector<8xf32>
    %423 = vector.shape_cast %422 : vector<8xf32> to vector<8x1xf32>
    %cst_244 = arith.constant dense<0.000000e+00> : vector<1xf32>
    %424 = vector.multi_reduction <add>, %423, %cst_244 [0] : vector<8x1xf32> to vector<1xf32>
    %425 = vector.shape_cast %424 : vector<1xf32> to vector<1x1xf32>
    %426 = arith.cmpf oge, %425, %367 : vector<1x1xf32>
    %427 = arith.select %426, %417, %413 : vector<1x1xi1>, vector<1x1xf32>
    %428 = arith.select %426, %414, %417 : vector<1x1xi1>, vector<1x1xf32>
    %c4_i32_245 = arith.constant 4 : i32
    %429 = arith.addf %427, %428 : vector<1x1xf32>
    %cst_246 = arith.constant 5.000000e-01 : f32
    %430 = vector.broadcast %cst_246 : f32 to vector<1x1xf32>
    %431 = arith.mulf %430, %429 : vector<1x1xf32>
    %432 = vector.broadcast %431 : vector<1x1xf32> to vector<8x128xf32>
    %433 = arith.cmpf ogt, %363, %432 : vector<8x128xf32>
    %434 = arith.extui %433 : vector<8x128xi1> to vector<8x128xi32>
    %435 = arith.sitofp %434 : vector<8x128xi32> to vector<8x128xf32>
    %cst_247 = arith.constant dense<0.000000e+00> : vector<8xf32>
    %436 = vector.multi_reduction <add>, %435, %cst_247 [1] : vector<8x128xf32> to vector<8xf32>
    %437 = vector.shape_cast %436 : vector<8xf32> to vector<8x1xf32>
    %cst_248 = arith.constant dense<0.000000e+00> : vector<1xf32>
    %438 = vector.multi_reduction <add>, %437, %cst_248 [0] : vector<8x1xf32> to vector<1xf32>
    %439 = vector.shape_cast %438 : vector<1xf32> to vector<1x1xf32>
    %440 = arith.cmpf oge, %439, %367 : vector<1x1xf32>
    %441 = arith.select %440, %431, %427 : vector<1x1xi1>, vector<1x1xf32>
    %442 = arith.select %440, %428, %431 : vector<1x1xi1>, vector<1x1xf32>
    %c5_i32_249 = arith.constant 5 : i32
    %443 = arith.addf %441, %442 : vector<1x1xf32>
    %cst_250 = arith.constant 5.000000e-01 : f32
    %444 = vector.broadcast %cst_250 : f32 to vector<1x1xf32>
    %445 = arith.mulf %444, %443 : vector<1x1xf32>
    %446 = vector.broadcast %445 : vector<1x1xf32> to vector<8x128xf32>
    %447 = arith.cmpf ogt, %363, %446 : vector<8x128xf32>
    %448 = arith.extui %447 : vector<8x128xi1> to vector<8x128xi32>
    %449 = arith.sitofp %448 : vector<8x128xi32> to vector<8x128xf32>
    %cst_251 = arith.constant dense<0.000000e+00> : vector<8xf32>
    %450 = vector.multi_reduction <add>, %449, %cst_251 [1] : vector<8x128xf32> to vector<8xf32>
    %451 = vector.shape_cast %450 : vector<8xf32> to vector<8x1xf32>
    %cst_252 = arith.constant dense<0.000000e+00> : vector<1xf32>
    %452 = vector.multi_reduction <add>, %451, %cst_252 [0] : vector<8x1xf32> to vector<1xf32>
    %453 = vector.shape_cast %452 : vector<1xf32> to vector<1x1xf32>
    %454 = arith.cmpf oge, %453, %367 : vector<1x1xf32>
    %455 = arith.select %454, %445, %441 : vector<1x1xi1>, vector<1x1xf32>
    %456 = arith.select %454, %442, %445 : vector<1x1xi1>, vector<1x1xf32>
    %c6_i32_253 = arith.constant 6 : i32
    %457 = arith.addf %455, %456 : vector<1x1xf32>
    %cst_254 = arith.constant 5.000000e-01 : f32
    %458 = vector.broadcast %cst_254 : f32 to vector<1x1xf32>
    %459 = arith.mulf %458, %457 : vector<1x1xf32>
    %460 = vector.broadcast %459 : vector<1x1xf32> to vector<8x128xf32>
    %461 = arith.cmpf ogt, %363, %460 : vector<8x128xf32>
    %462 = arith.extui %461 : vector<8x128xi1> to vector<8x128xi32>
    %463 = arith.sitofp %462 : vector<8x128xi32> to vector<8x128xf32>
    %cst_255 = arith.constant dense<0.000000e+00> : vector<8xf32>
    %464 = vector.multi_reduction <add>, %463, %cst_255 [1] : vector<8x128xf32> to vector<8xf32>
    %465 = vector.shape_cast %464 : vector<8xf32> to vector<8x1xf32>
    %cst_256 = arith.constant dense<0.000000e+00> : vector<1xf32>
    %466 = vector.multi_reduction <add>, %465, %cst_256 [0] : vector<8x1xf32> to vector<1xf32>
    %467 = vector.shape_cast %466 : vector<1xf32> to vector<1x1xf32>
    %468 = arith.cmpf oge, %467, %367 : vector<1x1xf32>
    %469 = arith.select %468, %459, %455 : vector<1x1xi1>, vector<1x1xf32>
    %470 = arith.select %468, %456, %459 : vector<1x1xi1>, vector<1x1xf32>
    %c7_i32_257 = arith.constant 7 : i32
    %471 = arith.addf %469, %470 : vector<1x1xf32>
    %cst_258 = arith.constant 5.000000e-01 : f32
    %472 = vector.broadcast %cst_258 : f32 to vector<1x1xf32>
    %473 = arith.mulf %472, %471 : vector<1x1xf32>
    %474 = vector.broadcast %473 : vector<1x1xf32> to vector<8x128xf32>
    %475 = arith.cmpf ogt, %363, %474 : vector<8x128xf32>
    %476 = arith.extui %475 : vector<8x128xi1> to vector<8x128xi32>
    %477 = arith.sitofp %476 : vector<8x128xi32> to vector<8x128xf32>
    %cst_259 = arith.constant dense<0.000000e+00> : vector<8xf32>
    %478 = vector.multi_reduction <add>, %477, %cst_259 [1] : vector<8x128xf32> to vector<8xf32>
    %479 = vector.shape_cast %478 : vector<8xf32> to vector<8x1xf32>
    %cst_260 = arith.constant dense<0.000000e+00> : vector<1xf32>
    %480 = vector.multi_reduction <add>, %479, %cst_260 [0] : vector<8x1xf32> to vector<1xf32>
    %481 = vector.shape_cast %480 : vector<1xf32> to vector<1x1xf32>
    %482 = arith.cmpf oge, %481, %367 : vector<1x1xf32>
    %483 = arith.select %482, %473, %469 : vector<1x1xi1>, vector<1x1xf32>
    %484 = arith.select %482, %470, %473 : vector<1x1xi1>, vector<1x1xf32>
    %c8_i32_261 = arith.constant 8 : i32
    %485 = arith.addf %483, %484 : vector<1x1xf32>
    %cst_262 = arith.constant 5.000000e-01 : f32
    %486 = vector.broadcast %cst_262 : f32 to vector<1x1xf32>
    %487 = arith.mulf %486, %485 : vector<1x1xf32>
    %488 = vector.broadcast %487 : vector<1x1xf32> to vector<8x128xf32>
    %489 = arith.cmpf ogt, %363, %488 : vector<8x128xf32>
    %490 = arith.extui %489 : vector<8x128xi1> to vector<8x128xi32>
    %491 = arith.sitofp %490 : vector<8x128xi32> to vector<8x128xf32>
    %cst_263 = arith.constant dense<0.000000e+00> : vector<8xf32>
    %492 = vector.multi_reduction <add>, %491, %cst_263 [1] : vector<8x128xf32> to vector<8xf32>
    %493 = vector.shape_cast %492 : vector<8xf32> to vector<8x1xf32>
    %cst_264 = arith.constant dense<0.000000e+00> : vector<1xf32>
    %494 = vector.multi_reduction <add>, %493, %cst_264 [0] : vector<8x1xf32> to vector<1xf32>
    %495 = vector.shape_cast %494 : vector<1xf32> to vector<1x1xf32>
    %496 = arith.cmpf oge, %495, %367 : vector<1x1xf32>
    %497 = arith.select %496, %487, %483 : vector<1x1xi1>, vector<1x1xf32>
    %498 = arith.select %496, %484, %487 : vector<1x1xi1>, vector<1x1xf32>
    %c9_i32_265 = arith.constant 9 : i32
    %499 = arith.addf %497, %498 : vector<1x1xf32>
    %cst_266 = arith.constant 5.000000e-01 : f32
    %500 = vector.broadcast %cst_266 : f32 to vector<1x1xf32>
    %501 = arith.mulf %500, %499 : vector<1x1xf32>
    %502 = vector.broadcast %501 : vector<1x1xf32> to vector<8x128xf32>
    %503 = arith.cmpf ogt, %363, %502 : vector<8x128xf32>
    %504 = arith.extui %503 : vector<8x128xi1> to vector<8x128xi32>
    %505 = arith.sitofp %504 : vector<8x128xi32> to vector<8x128xf32>
    %cst_267 = arith.constant dense<0.000000e+00> : vector<8xf32>
    %506 = vector.multi_reduction <add>, %505, %cst_267 [1] : vector<8x128xf32> to vector<8xf32>
    %507 = vector.shape_cast %506 : vector<8xf32> to vector<8x1xf32>
    %cst_268 = arith.constant dense<0.000000e+00> : vector<1xf32>
    %508 = vector.multi_reduction <add>, %507, %cst_268 [0] : vector<8x1xf32> to vector<1xf32>
    %509 = vector.shape_cast %508 : vector<1xf32> to vector<1x1xf32>
    %510 = arith.cmpf oge, %509, %367 : vector<1x1xf32>
    %511 = arith.select %510, %501, %497 : vector<1x1xi1>, vector<1x1xf32>
    %512 = arith.select %510, %498, %501 : vector<1x1xi1>, vector<1x1xf32>
    %c10_i32_269 = arith.constant 10 : i32
    %513 = arith.addf %511, %512 : vector<1x1xf32>
    %cst_270 = arith.constant 5.000000e-01 : f32
    %514 = vector.broadcast %cst_270 : f32 to vector<1x1xf32>
    %515 = arith.mulf %514, %513 : vector<1x1xf32>
    %516 = vector.broadcast %515 : vector<1x1xf32> to vector<8x128xf32>
    %517 = arith.cmpf ogt, %363, %516 : vector<8x128xf32>
    %518 = arith.extui %517 : vector<8x128xi1> to vector<8x128xi32>
    %519 = arith.sitofp %518 : vector<8x128xi32> to vector<8x128xf32>
    %cst_271 = arith.constant dense<0.000000e+00> : vector<8xf32>
    %520 = vector.multi_reduction <add>, %519, %cst_271 [1] : vector<8x128xf32> to vector<8xf32>
    %521 = vector.shape_cast %520 : vector<8xf32> to vector<8x1xf32>
    %cst_272 = arith.constant dense<0.000000e+00> : vector<1xf32>
    %522 = vector.multi_reduction <add>, %521, %cst_272 [0] : vector<8x1xf32> to vector<1xf32>
    %523 = vector.shape_cast %522 : vector<1xf32> to vector<1x1xf32>
    %524 = arith.cmpf oge, %523, %367 : vector<1x1xf32>
    %525 = arith.select %524, %515, %511 : vector<1x1xi1>, vector<1x1xf32>
    %526 = arith.select %524, %512, %515 : vector<1x1xi1>, vector<1x1xf32>
    %c11_i32_273 = arith.constant 11 : i32
    %527 = arith.addf %525, %526 : vector<1x1xf32>
    %cst_274 = arith.constant 5.000000e-01 : f32
    %528 = vector.broadcast %cst_274 : f32 to vector<1x1xf32>
    %529 = arith.mulf %528, %527 : vector<1x1xf32>
    %530 = vector.broadcast %529 : vector<1x1xf32> to vector<8x128xf32>
    %531 = arith.cmpf ogt, %363, %530 : vector<8x128xf32>
    %532 = arith.extui %531 : vector<8x128xi1> to vector<8x128xi32>
    %533 = arith.sitofp %532 : vector<8x128xi32> to vector<8x128xf32>
    %cst_275 = arith.constant dense<0.000000e+00> : vector<8xf32>
    %534 = vector.multi_reduction <add>, %533, %cst_275 [1] : vector<8x128xf32> to vector<8xf32>
    %535 = vector.shape_cast %534 : vector<8xf32> to vector<8x1xf32>
    %cst_276 = arith.constant dense<0.000000e+00> : vector<1xf32>
    %536 = vector.multi_reduction <add>, %535, %cst_276 [0] : vector<8x1xf32> to vector<1xf32>
    %537 = vector.shape_cast %536 : vector<1xf32> to vector<1x1xf32>
    %538 = arith.cmpf oge, %537, %367 : vector<1x1xf32>
    %539 = arith.select %538, %529, %525 : vector<1x1xi1>, vector<1x1xf32>
    %540 = arith.select %538, %526, %529 : vector<1x1xi1>, vector<1x1xf32>
    %c12_i32_277 = arith.constant 12 : i32
    %541 = arith.addf %539, %540 : vector<1x1xf32>
    %cst_278 = arith.constant 5.000000e-01 : f32
    %542 = vector.broadcast %cst_278 : f32 to vector<1x1xf32>
    %543 = arith.mulf %542, %541 : vector<1x1xf32>
    %544 = vector.broadcast %543 : vector<1x1xf32> to vector<8x128xf32>
    %545 = arith.cmpf ogt, %363, %544 : vector<8x128xf32>
    %546 = arith.extui %545 : vector<8x128xi1> to vector<8x128xi32>
    %547 = arith.sitofp %546 : vector<8x128xi32> to vector<8x128xf32>
    %cst_279 = arith.constant dense<0.000000e+00> : vector<8xf32>
    %548 = vector.multi_reduction <add>, %547, %cst_279 [1] : vector<8x128xf32> to vector<8xf32>
    %549 = vector.shape_cast %548 : vector<8xf32> to vector<8x1xf32>
    %cst_280 = arith.constant dense<0.000000e+00> : vector<1xf32>
    %550 = vector.multi_reduction <add>, %549, %cst_280 [0] : vector<8x1xf32> to vector<1xf32>
    %551 = vector.shape_cast %550 : vector<1xf32> to vector<1x1xf32>
    %552 = arith.cmpf oge, %551, %367 : vector<1x1xf32>
    %553 = arith.select %552, %543, %539 : vector<1x1xi1>, vector<1x1xf32>
    %554 = arith.select %552, %540, %543 : vector<1x1xi1>, vector<1x1xf32>
    %c13_i32_281 = arith.constant 13 : i32
    %555 = arith.addf %553, %554 : vector<1x1xf32>
    %cst_282 = arith.constant 5.000000e-01 : f32
    %556 = vector.broadcast %cst_282 : f32 to vector<1x1xf32>
    %557 = arith.mulf %556, %555 : vector<1x1xf32>
    %558 = vector.broadcast %557 : vector<1x1xf32> to vector<8x128xf32>
    %559 = arith.cmpf ogt, %363, %558 : vector<8x128xf32>
    %560 = arith.extui %559 : vector<8x128xi1> to vector<8x128xi32>
    %561 = arith.sitofp %560 : vector<8x128xi32> to vector<8x128xf32>
    %cst_283 = arith.constant dense<0.000000e+00> : vector<8xf32>
    %562 = vector.multi_reduction <add>, %561, %cst_283 [1] : vector<8x128xf32> to vector<8xf32>
    %563 = vector.shape_cast %562 : vector<8xf32> to vector<8x1xf32>
    %cst_284 = arith.constant dense<0.000000e+00> : vector<1xf32>
    %564 = vector.multi_reduction <add>, %563, %cst_284 [0] : vector<8x1xf32> to vector<1xf32>
    %565 = vector.shape_cast %564 : vector<1xf32> to vector<1x1xf32>
    %566 = arith.cmpf oge, %565, %367 : vector<1x1xf32>
    %567 = arith.select %566, %557, %553 : vector<1x1xi1>, vector<1x1xf32>
    %568 = arith.select %566, %554, %557 : vector<1x1xi1>, vector<1x1xf32>
    %c14_i32_285 = arith.constant 14 : i32
    %569 = arith.addf %567, %568 : vector<1x1xf32>
    %cst_286 = arith.constant 5.000000e-01 : f32
    %570 = vector.broadcast %cst_286 : f32 to vector<1x1xf32>
    %571 = arith.mulf %570, %569 : vector<1x1xf32>
    %572 = vector.broadcast %571 : vector<1x1xf32> to vector<8x128xf32>
    %573 = arith.cmpf ogt, %363, %572 : vector<8x128xf32>
    %574 = arith.extui %573 : vector<8x128xi1> to vector<8x128xi32>
    %575 = arith.sitofp %574 : vector<8x128xi32> to vector<8x128xf32>
    %cst_287 = arith.constant dense<0.000000e+00> : vector<8xf32>
    %576 = vector.multi_reduction <add>, %575, %cst_287 [1] : vector<8x128xf32> to vector<8xf32>
    %577 = vector.shape_cast %576 : vector<8xf32> to vector<8x1xf32>
    %cst_288 = arith.constant dense<0.000000e+00> : vector<1xf32>
    %578 = vector.multi_reduction <add>, %577, %cst_288 [0] : vector<8x1xf32> to vector<1xf32>
    %579 = vector.shape_cast %578 : vector<1xf32> to vector<1x1xf32>
    %580 = arith.cmpf oge, %579, %367 : vector<1x1xf32>
    %581 = arith.select %580, %571, %567 : vector<1x1xi1>, vector<1x1xf32>
    %582 = arith.select %580, %568, %571 : vector<1x1xi1>, vector<1x1xf32>
    %c15_i32_289 = arith.constant 15 : i32
    %583 = arith.addf %581, %582 : vector<1x1xf32>
    %cst_290 = arith.constant 5.000000e-01 : f32
    %584 = vector.broadcast %cst_290 : f32 to vector<1x1xf32>
    %585 = arith.mulf %584, %583 : vector<1x1xf32>
    %586 = vector.broadcast %585 : vector<1x1xf32> to vector<8x128xf32>
    %587 = arith.cmpf ogt, %363, %586 : vector<8x128xf32>
    %588 = arith.extui %587 : vector<8x128xi1> to vector<8x128xi32>
    %589 = arith.sitofp %588 : vector<8x128xi32> to vector<8x128xf32>
    %cst_291 = arith.constant dense<0.000000e+00> : vector<8xf32>
    %590 = vector.multi_reduction <add>, %589, %cst_291 [1] : vector<8x128xf32> to vector<8xf32>
    %591 = vector.shape_cast %590 : vector<8xf32> to vector<8x1xf32>
    %cst_292 = arith.constant dense<0.000000e+00> : vector<1xf32>
    %592 = vector.multi_reduction <add>, %591, %cst_292 [0] : vector<8x1xf32> to vector<1xf32>
    %593 = vector.shape_cast %592 : vector<1xf32> to vector<1x1xf32>
    %594 = arith.cmpf oge, %593, %367 : vector<1x1xf32>
    %595 = arith.select %594, %585, %581 : vector<1x1xi1>, vector<1x1xf32>
    %596 = arith.select %594, %582, %585 : vector<1x1xi1>, vector<1x1xf32>
    %c16_i32_293 = arith.constant 16 : i32
    %597 = arith.addf %595, %596 : vector<1x1xf32>
    %cst_294 = arith.constant 5.000000e-01 : f32
    %598 = vector.broadcast %cst_294 : f32 to vector<1x1xf32>
    %599 = arith.mulf %598, %597 : vector<1x1xf32>
    %600 = vector.broadcast %599 : vector<1x1xf32> to vector<8x128xf32>
    %601 = arith.cmpf ogt, %363, %600 : vector<8x128xf32>
    %602 = arith.extui %601 : vector<8x128xi1> to vector<8x128xi32>
    %603 = arith.sitofp %602 : vector<8x128xi32> to vector<8x128xf32>
    %cst_295 = arith.constant dense<0.000000e+00> : vector<8xf32>
    %604 = vector.multi_reduction <add>, %603, %cst_295 [1] : vector<8x128xf32> to vector<8xf32>
    %605 = vector.shape_cast %604 : vector<8xf32> to vector<8x1xf32>
    %cst_296 = arith.constant dense<0.000000e+00> : vector<1xf32>
    %606 = vector.multi_reduction <add>, %605, %cst_296 [0] : vector<8x1xf32> to vector<1xf32>
    %607 = vector.shape_cast %606 : vector<1xf32> to vector<1x1xf32>
    %608 = arith.cmpf oge, %607, %367 : vector<1x1xf32>
    %609 = arith.select %608, %599, %595 : vector<1x1xi1>, vector<1x1xf32>
    %610 = arith.select %608, %596, %599 : vector<1x1xi1>, vector<1x1xf32>
    %c17_i32_297 = arith.constant 17 : i32
    %611 = arith.addf %609, %610 : vector<1x1xf32>
    %cst_298 = arith.constant 5.000000e-01 : f32
    %612 = vector.broadcast %cst_298 : f32 to vector<1x1xf32>
    %613 = arith.mulf %612, %611 : vector<1x1xf32>
    %614 = vector.broadcast %613 : vector<1x1xf32> to vector<8x128xf32>
    %615 = arith.cmpf ogt, %363, %614 : vector<8x128xf32>
    %616 = arith.extui %615 : vector<8x128xi1> to vector<8x128xi32>
    %617 = arith.sitofp %616 : vector<8x128xi32> to vector<8x128xf32>
    %cst_299 = arith.constant dense<0.000000e+00> : vector<8xf32>
    %618 = vector.multi_reduction <add>, %617, %cst_299 [1] : vector<8x128xf32> to vector<8xf32>
    %619 = vector.shape_cast %618 : vector<8xf32> to vector<8x1xf32>
    %cst_300 = arith.constant dense<0.000000e+00> : vector<1xf32>
    %620 = vector.multi_reduction <add>, %619, %cst_300 [0] : vector<8x1xf32> to vector<1xf32>
    %621 = vector.shape_cast %620 : vector<1xf32> to vector<1x1xf32>
    %622 = arith.cmpf oge, %621, %367 : vector<1x1xf32>
    %623 = arith.select %622, %613, %609 : vector<1x1xi1>, vector<1x1xf32>
    %624 = arith.select %622, %610, %613 : vector<1x1xi1>, vector<1x1xf32>
    %c18_i32_301 = arith.constant 18 : i32
    %625 = arith.addf %623, %624 : vector<1x1xf32>
    %cst_302 = arith.constant 5.000000e-01 : f32
    %626 = vector.broadcast %cst_302 : f32 to vector<1x1xf32>
    %627 = arith.mulf %626, %625 : vector<1x1xf32>
    %628 = vector.broadcast %627 : vector<1x1xf32> to vector<8x128xf32>
    %629 = arith.cmpf ogt, %363, %628 : vector<8x128xf32>
    %630 = arith.extui %629 : vector<8x128xi1> to vector<8x128xi32>
    %631 = arith.sitofp %630 : vector<8x128xi32> to vector<8x128xf32>
    %cst_303 = arith.constant dense<0.000000e+00> : vector<8xf32>
    %632 = vector.multi_reduction <add>, %631, %cst_303 [1] : vector<8x128xf32> to vector<8xf32>
    %633 = vector.shape_cast %632 : vector<8xf32> to vector<8x1xf32>
    %cst_304 = arith.constant dense<0.000000e+00> : vector<1xf32>
    %634 = vector.multi_reduction <add>, %633, %cst_304 [0] : vector<8x1xf32> to vector<1xf32>
    %635 = vector.shape_cast %634 : vector<1xf32> to vector<1x1xf32>
    %636 = arith.cmpf oge, %635, %367 : vector<1x1xf32>
    %637 = arith.select %636, %627, %623 : vector<1x1xi1>, vector<1x1xf32>
    %638 = arith.select %636, %624, %627 : vector<1x1xi1>, vector<1x1xf32>
    %c19_i32_305 = arith.constant 19 : i32
    %639 = arith.addf %637, %638 : vector<1x1xf32>
    %cst_306 = arith.constant 5.000000e-01 : f32
    %640 = vector.broadcast %cst_306 : f32 to vector<1x1xf32>
    %641 = arith.mulf %640, %639 : vector<1x1xf32>
    %642 = vector.broadcast %641 : vector<1x1xf32> to vector<8x128xf32>
    %643 = arith.cmpf ogt, %363, %642 : vector<8x128xf32>
    %644 = arith.extui %643 : vector<8x128xi1> to vector<8x128xi32>
    %645 = arith.sitofp %644 : vector<8x128xi32> to vector<8x128xf32>
    %cst_307 = arith.constant dense<0.000000e+00> : vector<8xf32>
    %646 = vector.multi_reduction <add>, %645, %cst_307 [1] : vector<8x128xf32> to vector<8xf32>
    %647 = vector.shape_cast %646 : vector<8xf32> to vector<8x1xf32>
    %cst_308 = arith.constant dense<0.000000e+00> : vector<1xf32>
    %648 = vector.multi_reduction <add>, %647, %cst_308 [0] : vector<8x1xf32> to vector<1xf32>
    %649 = vector.shape_cast %648 : vector<1xf32> to vector<1x1xf32>
    %650 = arith.cmpf oge, %649, %367 : vector<1x1xf32>
    %651 = arith.select %650, %641, %637 : vector<1x1xi1>, vector<1x1xf32>
    %652 = arith.select %650, %638, %641 : vector<1x1xi1>, vector<1x1xf32>
    %c20_i32_309 = arith.constant 20 : i32
    %653 = arith.addf %651, %652 : vector<1x1xf32>
    %cst_310 = arith.constant 5.000000e-01 : f32
    %654 = vector.broadcast %cst_310 : f32 to vector<1x1xf32>
    %655 = arith.mulf %654, %653 : vector<1x1xf32>
    %656 = vector.broadcast %655 : vector<1x1xf32> to vector<8x128xf32>
    %657 = arith.cmpf ogt, %363, %656 : vector<8x128xf32>
    %658 = arith.extui %657 : vector<8x128xi1> to vector<8x128xi32>
    %659 = arith.sitofp %658 : vector<8x128xi32> to vector<8x128xf32>
    %cst_311 = arith.constant dense<0.000000e+00> : vector<8xf32>
    %660 = vector.multi_reduction <add>, %659, %cst_311 [1] : vector<8x128xf32> to vector<8xf32>
    %661 = vector.shape_cast %660 : vector<8xf32> to vector<8x1xf32>
    %cst_312 = arith.constant dense<0.000000e+00> : vector<1xf32>
    %662 = vector.multi_reduction <add>, %661, %cst_312 [0] : vector<8x1xf32> to vector<1xf32>
    %663 = vector.shape_cast %662 : vector<1xf32> to vector<1x1xf32>
    %664 = arith.cmpf oge, %663, %367 : vector<1x1xf32>
    %665 = arith.select %664, %655, %651 : vector<1x1xi1>, vector<1x1xf32>
    %666 = arith.select %664, %652, %655 : vector<1x1xi1>, vector<1x1xf32>
    %c21_i32 = arith.constant 21 : i32
    %667 = arith.addf %665, %666 : vector<1x1xf32>
    %cst_313 = arith.constant 5.000000e-01 : f32
    %668 = vector.broadcast %cst_313 : f32 to vector<1x1xf32>
    %669 = arith.mulf %668, %667 : vector<1x1xf32>
    %670 = vector.broadcast %669 : vector<1x1xf32> to vector<8x128xf32>
    %671 = arith.cmpf ogt, %363, %670 : vector<8x128xf32>
    %672 = arith.extui %671 : vector<8x128xi1> to vector<8x128xi32>
    %673 = arith.sitofp %672 : vector<8x128xi32> to vector<8x128xf32>
    %cst_314 = arith.constant dense<0.000000e+00> : vector<8xf32>
    %674 = vector.multi_reduction <add>, %673, %cst_314 [1] : vector<8x128xf32> to vector<8xf32>
    %675 = vector.shape_cast %674 : vector<8xf32> to vector<8x1xf32>
    %cst_315 = arith.constant dense<0.000000e+00> : vector<1xf32>
    %676 = vector.multi_reduction <add>, %675, %cst_315 [0] : vector<8x1xf32> to vector<1xf32>
    %677 = vector.shape_cast %676 : vector<1xf32> to vector<1x1xf32>
    %678 = arith.cmpf oge, %677, %367 : vector<1x1xf32>
    %679 = arith.select %678, %669, %665 : vector<1x1xi1>, vector<1x1xf32>
    %680 = arith.select %678, %666, %669 : vector<1x1xi1>, vector<1x1xf32>
    %c22_i32 = arith.constant 22 : i32
    %681 = arith.addf %679, %680 : vector<1x1xf32>
    %cst_316 = arith.constant 5.000000e-01 : f32
    %682 = vector.broadcast %cst_316 : f32 to vector<1x1xf32>
    %683 = arith.mulf %682, %681 : vector<1x1xf32>
    %684 = vector.broadcast %683 : vector<1x1xf32> to vector<8x128xf32>
    %685 = arith.cmpf ogt, %363, %684 : vector<8x128xf32>
    %686 = arith.extui %685 : vector<8x128xi1> to vector<8x128xi32>
    %687 = arith.sitofp %686 : vector<8x128xi32> to vector<8x128xf32>
    %cst_317 = arith.constant dense<0.000000e+00> : vector<8xf32>
    %688 = vector.multi_reduction <add>, %687, %cst_317 [1] : vector<8x128xf32> to vector<8xf32>
    %689 = vector.shape_cast %688 : vector<8xf32> to vector<8x1xf32>
    %cst_318 = arith.constant dense<0.000000e+00> : vector<1xf32>
    %690 = vector.multi_reduction <add>, %689, %cst_318 [0] : vector<8x1xf32> to vector<1xf32>
    %691 = vector.shape_cast %690 : vector<1xf32> to vector<1x1xf32>
    %692 = arith.cmpf oge, %691, %367 : vector<1x1xf32>
    %693 = arith.select %692, %683, %679 : vector<1x1xi1>, vector<1x1xf32>
    %694 = arith.select %692, %680, %683 : vector<1x1xi1>, vector<1x1xf32>
    %c23_i32 = arith.constant 23 : i32
    %695 = arith.addf %693, %694 : vector<1x1xf32>
    %cst_319 = arith.constant 5.000000e-01 : f32
    %696 = vector.broadcast %cst_319 : f32 to vector<1x1xf32>
    %697 = arith.mulf %696, %695 : vector<1x1xf32>
    %698 = vector.broadcast %697 : vector<1x1xf32> to vector<8x128xf32>
    %699 = arith.cmpf ogt, %363, %698 : vector<8x128xf32>
    %700 = arith.extui %699 : vector<8x128xi1> to vector<8x128xi32>
    %701 = arith.sitofp %700 : vector<8x128xi32> to vector<8x128xf32>
    %cst_320 = arith.constant dense<0.000000e+00> : vector<8xf32>
    %702 = vector.multi_reduction <add>, %701, %cst_320 [1] : vector<8x128xf32> to vector<8xf32>
    %703 = vector.shape_cast %702 : vector<8xf32> to vector<8x1xf32>
    %cst_321 = arith.constant dense<0.000000e+00> : vector<1xf32>
    %704 = vector.multi_reduction <add>, %703, %cst_321 [0] : vector<8x1xf32> to vector<1xf32>
    %705 = vector.shape_cast %704 : vector<1xf32> to vector<1x1xf32>
    %706 = arith.cmpf oge, %705, %367 : vector<1x1xf32>
    %707 = arith.select %706, %697, %693 : vector<1x1xi1>, vector<1x1xf32>
    %708 = arith.select %706, %694, %697 : vector<1x1xi1>, vector<1x1xf32>
    %709 = vector.broadcast %708 : vector<1x1xf32> to vector<8x128xf32>
    %710 = arith.cmpf ogt, %363, %709 : vector<8x128xf32>
    %711 = arith.extui %710 : vector<8x128xi1> to vector<8x128xi32>
    %712 = arith.sitofp %711 : vector<8x128xi32> to vector<8x128xf32>
    %cst_322 = arith.constant dense<0.000000e+00> : vector<8xf32>
    %713 = vector.multi_reduction <add>, %712, %cst_322 [1] : vector<8x128xf32> to vector<8xf32>
    %714 = vector.shape_cast %713 : vector<8xf32> to vector<8x1xf32>
    %cst_323 = arith.constant dense<0.000000e+00> : vector<1xf32>
    %715 = vector.multi_reduction <add>, %714, %cst_323 [0] : vector<8x1xf32> to vector<1xf32>
    %716 = vector.shape_cast %715 : vector<1xf32> to vector<1x1xf32>
    %717 = arith.mulf %363, %712 : vector<8x128xf32>
    %cst_324 = arith.constant dense<0.000000e+00> : vector<8xf32>
    %718 = vector.multi_reduction <add>, %717, %cst_324 [1] : vector<8x128xf32> to vector<8xf32>
    %719 = vector.shape_cast %718 : vector<8xf32> to vector<8x1xf32>
    %cst_325 = arith.constant dense<0.000000e+00> : vector<1xf32>
    %720 = vector.multi_reduction <add>, %719, %cst_325 [0] : vector<8x1xf32> to vector<1xf32>
    %721 = vector.shape_cast %720 : vector<1xf32> to vector<1x1xf32>
    %722 = arith.subf %367, %716 : vector<1x1xf32>
    %cst_326 = arith.constant 0.000000e+00 : f32
    %723 = vector.broadcast %cst_326 : f32 to vector<1x1xf32>
    %724 = arith.maximumf %722, %723 : vector<1x1xf32>
    %725 = arith.mulf %724, %708 : vector<1x1xf32>
    %726 = arith.addf %721, %725 : vector<1x1xf32>
    %727 = arith.mulf %286, %5 : vector<8x128xf32>
    %cst_327 = arith.constant dense<0.000000e+00> : vector<8xf32>
    %728 = vector.multi_reduction <add>, %727, %cst_327 [1] : vector<8x128xf32> to vector<8xf32>
    %729 = vector.shape_cast %728 : vector<8xf32> to vector<8x1xf32>
    %cst_328 = arith.constant dense<0.000000e+00> : vector<1xf32>
    %730 = vector.multi_reduction <add>, %729, %cst_328 [0] : vector<8x1xf32> to vector<1xf32>
    %731 = vector.shape_cast %730 : vector<1xf32> to vector<1x1xf32>
    %732 = arith.addf %731, %726 : vector<1x1xf32>
    %733 = tpu.iota {dimensions = array<i32: 0>} : vector<8x128xi32>
    %c0_i32_329 = arith.constant 0 : i32
    %734 = vector.broadcast %c0_i32_329 : i32 to vector<8x128xi32>
    %735 = arith.cmpi eq, %733, %734 : vector<8x128xi32>
    %c1_i32_330 = arith.constant 1 : i32
    %736 = vector.broadcast %c1_i32_330 : i32 to vector<8x128xi32>
    %737 = arith.cmpi eq, %733, %736 : vector<8x128xi32>
    %738 = vector.shape_cast %732 : vector<1x1xf32> to vector<1x1xf32>
    %739 = vector.broadcast %738 : vector<1x1xf32> to vector<8x128xf32>
    %740 = vector.shape_cast %9 : vector<1x1xf32> to vector<1x1xf32>
    %741 = vector.broadcast %740 : vector<1x1xf32> to vector<8x128xf32>
    %742 = arith.select %737, %739, %741 : vector<8x128xi1>, vector<8x128xf32>
    %743 = vector.shape_cast %352 : vector<1x1xf32> to vector<1x1xf32>
    %744 = vector.broadcast %743 : vector<1x1xf32> to vector<8x128xf32>
    %745 = arith.select %735, %744, %742 : vector<8x128xi1>, vector<8x128xf32>
    %c0_331 = arith.constant 0 : index
    %c0_332 = arith.constant 0 : index
    %c0_333 = arith.constant 0 : index
    %746 = vector.load %arg5[%c0_331, %c0_332, %c0_333] : memref<1x8x128xf32, #tpu.memory_space<vmem>>, vector<1x8x128xf32>
    %747 = vector.shape_cast %746 : vector<1x8x128xf32> to vector<8x128xf32>
    %748 = vector.shape_cast %745 : vector<8x128xf32> to vector<1x8x128xf32>
    tpu.vector_store %arg5[%c0_331, %c0_332, %c0_333], %748 {strides = array<i32>} : memref<1x8x128xf32, #tpu.memory_space<vmem>>, vector<1x8x128xf32>,
    return
  }
  func.func @transform_0(%arg0: i32) -> (i32, i32, i32, i32) {
    %c0_i32 = arith.constant 0 : i32
    %c0_i32_0 = arith.constant 0 : i32
    %c0_i32_1 = arith.constant 0 : i32
    %c0_i32_2 = arith.constant 0 : i32
    return %arg0, %c0_i32, %c0_i32_0, %c0_i32_1 : i32, i32, i32, i32
  }
  func.func @transform_1(%arg0: i32) -> (i32, i32, i32, i32) {
    %c0_i32 = arith.constant 0 : i32
    %c0_i32_0 = arith.constant 0 : i32
    %c0_i32_1 = arith.constant 0 : i32
    %c0_i32_2 = arith.constant 0 : i32
    return %arg0, %c0_i32, %c0_i32_0, %c0_i32_1 : i32, i32, i32, i32
  }
  func.func @transform_2(%arg0: i32) -> (i32, i32, i32, i32) {
    %c0_i32 = arith.constant 0 : i32
    %c0_i32_0 = arith.constant 0 : i32
    %c0_i32_1 = arith.constant 0 : i32
    %c0_i32_2 = arith.constant 0 : i32
    return %arg0, %c0_i32, %c0_i32_0, %c0_i32_1 : i32, i32, i32, i32
  }
  func.func @transform_3(%arg0: i32) -> (i32, i32, i32) {
    %c0_i32 = arith.constant 0 : i32
    %c0_i32_0 = arith.constant 0 : i32
    %c0_i32_1 = arith.constant 0 : i32
    return %arg0, %c0_i32, %c0_i32_0 : i32, i32, i32
  }
  func.func @transform_4(%arg0: i32) -> (i32, i32, i32) {
    %c0_i32 = arith.constant 0 : i32
    %c0_i32_0 = arith.constant 0 : i32
    %c0_i32_1 = arith.constant 0 : i32
    return %arg0, %c0_i32, %c0_i32_0 : i32, i32, i32
  }
}

</mosaic_0001>

<llo_original>
// kernel: tpu_custom_call.1
$region0: #{tpu_custom_call.1}
  #allocation0 [shape = 'u32[]', space=smem, size = 0x4, offset = 0x4, fixed_abs, tag = 'smem constant byte address 0x4 - core index']
  #allocation1 [shape = 'u32[72,128]{1,0:T(1,128)}', space=vmem, size = 0x9000, scoped, tag = 'internal scratch']
  %s0 = inlined_call_operand.hbm [shape: f32[2,4,8,128], index: 0, kind: input, shape index: {}]
  %s1 = inlined_call_operand.hbm [shape: f32[2,21,8,128], index: 1, kind: input, shape index: {}]
  %s2 = inlined_call_operand.hbm [shape: f32[2,4,8,128], index: 2, kind: input, shape index: {}]
  %s3 = inlined_call_operand.hbm [shape: s32[2,8,128], index: 3, kind: input, shape index: {}]
  %s4 = inlined_call_operand.hbm [shape: f32[2,8,128], index: 4, kind: output, shape index: {}]
  %s5 = sld [smem:[#allocation0]]
  $region65: #{tpu_custom_call.1} parent=0
    _
  %s7 = ssub.s32 1, %s5
  %s8 = scalar_select 0, %s7, %s5
  $region1: #{tpu_custom_call.1} parent=0
    #allocation2 [shape = 'u8[32768]{0}', space=vmem, size = 0x8000, scoped, tag = 'input window, operand 0']
    #allocation3 [shape = 's32[2]{0}', space=sflag, size = 0x8, scoped, tag = 'scoped memory for tpu_custom_call.1']
    #allocation4 [shape = 's32[2]{0}', space=sflag, size = 0x8, scoped, tag = 'scoped memory for tpu_custom_call.1']
    #allocation5 [shape = 'u8[172032]{0}', space=vmem, size = 0x2a000, scoped, tag = 'input window, operand 1']
    #allocation6 [shape = 's32[2]{0}', space=sflag, size = 0x8, scoped, tag = 'scoped memory for tpu_custom_call.1']
    #allocation7 [shape = 'u8[32768]{0}', space=vmem, size = 0x8000, scoped, tag = 'input window, operand 2']
    #allocation8 [shape = 'u8[8192]{0}', space=vmem, size = 0x2000, scoped, tag = 'input window, operand 3']
    #allocation9 [shape = 's32[2]{0}', space=sflag, size = 0x8, scoped, tag = 'scoped memory for tpu_custom_call.1']
    #allocation10 [shape = 'u8[8192]{0}', space=vmem, size = 0x2000, scoped, tag = 'output window, operand 0']
    %9 = vsyncpa [#allocation3], 0
    %s10 = scalar_lea.sflag [#allocation3], 1
    %11 = vsyncpa %s10, 0
    %12 = vsyncpa [#allocation6], 0
    %s13 = scalar_lea.sflag [#allocation6], 1
    %14 = vsyncpa %s13, 0
    %15 = vsyncpa [#allocation9], 0
    %s16 = scalar_lea.sflag [#allocation9], 1
    %17 = vsyncpa %s16, 0
    %18 = vsyncpa [#allocation4], 0
    %s19 = scalar_lea.sflag [#allocation4], 1
    %20 = vsyncpa %s19, 0
    loop: start=0, step=1, limit=4
    $region2: #{tpu_custom_call.1} parent=1 // loop_pre_header
      _
    $region3: #{tpu_custom_call.1} parent=1 // loop_header
      %s22 = sphi 0, %s26
      %p23 = scmp.ge.s32.totalorder %s22, 4
      %s32 = sphi 0, %s34
      %s35 = sphi 0, %s32
      %s36 = sphi 0, %s35
      %s52 = sphi 0, %s36
      %s58 = sphi 0, %s60
      %s61 = sphi 0, %s58
      %s62 = sphi 0, %s61
      %s78 = sphi 0, %s62
      %s84 = sphi 0, %s86
      %s87 = sphi 0, %s84
      %s88 = sphi 0, %s87
      %s104 = sphi 0, %s88
      %s110 = sphi 0, %s112
      %s113 = sphi 0, %s110
      %s114 = sphi 0, %s113
      %s130 = sphi 0, %s114
      %s136 = sphi 0, %s138
      %s139 = sphi 0, %s136
      %s140 = sphi 0, %s139
      %s156 = sphi 0, %s140
    $region4: #{tpu_custom_call.1} parent=1 // loop_header_branch
      %25 = sbr.rel (%p23) target = $region8
    $region5: #{tpu_custom_call.1} parent=1 // loop_body
      %s27 = ssub.s32 %s22, 1
      %s28 = ssub.s32 %s22, 2
      %s29 = sadd.s32 %s22, 1
      %s30 = ssub.s32 %s22, %s29
      %p31 = scmp.eq.s32.totalorder %s30, 0
      %s33 = sadd.s32 %s32, 1
      %s34 = scalar_select %p31, %s32, %s33
      %p37 = pneg %p31
      %p38 = scmp.eq.s32.totalorder %s22, 1
      %p39 = por %p37, %p38
      %p40 = scmp.ne.s32.totalorder %s32, %s35
      %p41 = scmp.eq.s32.totalorder %s22, 0
      %p42 = por %p40, %p41
      %p43 = scmp.ne.s32.totalorder %s32, %s35
      %p44 = scmp.eq.s32.totalorder %s27, 1
      %p45 = por %p43, %p44
      %p46 = scmp.ne.s32.totalorder %s35, %s36
      %p47 = scmp.eq.s32.totalorder %s27, 0
      %p48 = por %p46, %p47
      %p49 = scmp.ne.s32.totalorder %s35, %s36
      %p50 = scmp.eq.s32.totalorder %s28, 1
      %p51 = por %p49, %p50
      %p53 = scmp.ne.s32.totalorder %s36, %s52
      %p54 = scmp.eq.s32.totalorder %s28, 0
      %p55 = por %p53, %p54
      %s56 = ssub.s32 %s22, %s29
      %p57 = scmp.eq.s32.totalorder %s56, 0
      %s59 = sadd.s32 %s58, 1
      %s60 = scalar_select %p57, %s58, %s59
      %p63 = pneg %p57
      %p64 = scmp.eq.s32.totalorder %s22, 1
      %p65 = por %p63, %p64
      %p66 = scmp.ne.s32.totalorder %s58, %s61
      %p67 = scmp.eq.s32.totalorder %s22, 0
      %p68 = por %p66, %p67
      %p69 = scmp.ne.s32.totalorder %s58, %s61
      %p70 = scmp.eq.s32.totalorder %s27, 1
      %p71 = por %p69, %p70
      %p72 = scmp.ne.s32.totalorder %s61, %s62
      %p73 = scmp.eq.s32.totalorder %s27, 0
      %p74 = por %p72, %p73
      %p75 = scmp.ne.s32.totalorder %s61, %s62
      %p76 = scmp.eq.s32.totalorder %s28, 1
      %p77 = por %p75, %p76
      %p79 = scmp.ne.s32.totalorder %s62, %s78
      %p80 = scmp.eq.s32.totalorder %s28, 0
      %p81 = por %p79, %p80
      %s82 = ssub.s32 %s22, %s29
      %p83 = scmp.eq.s32.totalorder %s82, 0
      %s85 = sadd.s32 %s84, 1
      %s86 = scalar_select %p83, %s84, %s85
      %p89 = pneg %p83
      %p90 = scmp.eq.s32.totalorder %s22, 1
      %p91 = por %p89, %p90
      %p92 = scmp.ne.s32.totalorder %s84, %s87
      %p93 = scmp.eq.s32.totalorder %s22, 0
      %p94 = por %p92, %p93
      %p95 = scmp.ne.s32.totalorder %s84, %s87
      %p96 = scmp.eq.s32.totalorder %s27, 1
      %p97 = por %p95, %p96
      %p98 = scmp.ne.s32.totalorder %s87, %s88
      %p99 = scmp.eq.s32.totalorder %s27, 0
      %p100 = por %p98, %p99
      %p101 = scmp.ne.s32.totalorder %s87, %s88
      %p102 = scmp.eq.s32.totalorder %s28, 1
      %p103 = por %p101, %p102
      %p105 = scmp.ne.s32.totalorder %s88, %s104
      %p106 = scmp.eq.s32.totalorder %s28, 0
      %p107 = por %p105, %p106
      %s108 = ssub.s32 %s22, %s29
      %p109 = scmp.eq.s32.totalorder %s108, 0
      %s111 = sadd.s32 %s110, 1
      %s112 = scalar_select %p109, %s110, %s111
      %p115 = pneg %p109
      %p116 = scmp.eq.s32.totalorder %s22, 1
      %p117 = por %p115, %p116
      %p118 = scmp.ne.s32.totalorder %s110, %s113
      %p119 = scmp.eq.s32.totalorder %s22, 0
      %p120 = por %p118, %p119
      %p121 = scmp.ne.s32.totalorder %s110, %s113
      %p122 = scmp.eq.s32.totalorder %s27, 1
      %p123 = por %p121, %p122
      %p124 = scmp.ne.s32.totalorder %s113, %s114
      %p125 = scmp.eq.s32.totalorder %s27, 0
      %p126 = por %p124, %p125
      %p127 = scmp.ne.s32.totalorder %s113, %s114
      %p128 = scmp.eq.s32.totalorder %s28, 1
      %p129 = por %p127, %p128
      %p131 = scmp.ne.s32.totalorder %s114, %s130
      %p132 = scmp.eq.s32.totalorder %s28, 0
      %p133 = por %p131, %p132
      %s134 = ssub.s32 %s22, %s29
      %p135 = scmp.eq.s32.totalorder %s134, 0
      %s137 = sadd.s32 %s136, 1
      %s138 = scalar_select %p135, %s136, %s137
      %p141 = pneg %p135
      %p142 = scmp.eq.s32.totalorder %s22, 1
      %p143 = por %p141, %p142
      %p144 = scmp.ne.s32.totalorder %s136, %s139
      %p145 = scmp.eq.s32.totalorder %s22, 0
      %p146 = por %p144, %p145
      %p147 = scmp.ne.s32.totalorder %s136, %s139
      %p148 = scmp.eq.s32.totalorder %s27, 1
      %p149 = por %p147, %p148
      %p150 = scmp.ne.s32.totalorder %s139, %s140
      %p151 = scmp.eq.s32.totalorder %s27, 0
      %p152 = por %p150, %p151
      %p153 = scmp.ne.s32.totalorder %s139, %s140
      %p154 = scmp.eq.s32.totalorder %s28, 1
      %p155 = por %p153, %p154
      %p157 = scmp.ne.s32.totalorder %s140, %s156
      %p158 = scmp.eq.s32.totalorder %s28, 0
      %p159 = por %p157, %p158
      %p160 = scmp.le.s32.totalorder 1, %s22
      %p161 = scmp.lt.s32.totalorder %s22, 3
      %p162 = pnand %p160, %p161
      %p163 = pneg %p162
      // Predicated region
      $region9: #{tpu_custom_call.1} parent=5 // pred_check
        _
      $region10: #{tpu_custom_call.1} parent=5 // pred_check_branch
        %165 = sbr.rel (%p162) target = $region12
      $region11: #{tpu_custom_call.1} parent=5 // pred_region
        %s166 = ssub.s32 %s22, 1
      $region12: #{tpu_custom_call.1} parent=5 // pred_fallthru
        _
      %p167 = scmp.lt.s32.totalorder %s22, 2
      // Predicated region
      $region13: #{tpu_custom_call.1} parent=5 // pred_check
        %p168 = pneg %p167
      $region14: #{tpu_custom_call.1} parent=5 // pred_check_branch
        %170 = sbr.rel (%p168) target = $region16
      $region15: #{tpu_custom_call.1} parent=5 // pred_region
        // Predicated region
        $region17: #{tpu_custom_call.1} parent=15 // pred_check
          %p171 = pneg %p42
        $region18: #{tpu_custom_call.1} parent=15 // pred_check_branch
          %173 = sbr.rel (%p171) target = $region20
        $region19: #{tpu_custom_call.1} parent=15 // pred_region
          %s174 = sand.u32 %s32, 1
          %s175 = scalar_lea.sflag [#allocation3], %s174
          %s176 = sand.u32 %s32, 1
          %s177 = smul.addr %s176, 32
          %s178 = scalar_lea.vmem [#allocation2], %s177
          %180 = vsyncadd %s175, 0
          %s181 = smul.addr %s22, 4
          %s182 = smul.addr %s181, 8
          %s183 = scalar_lea.hbm %s0, %s182
          %s184 = sshll.u32 %s183, 4
          %s185 = int_to_ptr.hbm [resolvable:$true] %s184
          %s186 = sshll.u32 %s178, 4
          %s187 = int_to_ptr.vmem [resolvable:$true] %s186
          %192 = dma.hbm_to_vmem [thread:$0]  %s185, 512, %s187, %s175, 128, 128, 8
        $region20: #{tpu_custom_call.1} parent=15 // pred_fallthru
          _
        // Predicated region
        $region21: #{tpu_custom_call.1} parent=15 // pred_check
          %p193 = pneg %p68
        $region22: #{tpu_custom_call.1} parent=15 // pred_check_branch
          %195 = sbr.rel (%p193) target = $region24
        $region23: #{tpu_custom_call.1} parent=15 // pred_region
          %s196 = sand.u32 %s22, 1
          %s197 = scalar_lea.sflag [#allocation6], %s196
          %s198 = sand.u32 %s58, 1
          %s199 = smul.addr %s198, 168
          %s200 = scalar_lea.vmem [#allocation5], %s199
          %202 = vsyncadd %s197, 0
          %s203 = smul.addr %s22, 21
          %s204 = smul.addr %s203, 8
          %s205 = scalar_lea.hbm %s1, %s204
          %s206 = sshll.u32 %s205, 4
          %s207 = int_to_ptr.hbm [resolvable:$true] %s206
          %s208 = sshll.u32 %s200, 4
          %s209 = int_to_ptr.vmem [resolvable:$true] %s208
          %214 = dma.hbm_to_vmem [thread:$0]  %s207, 2688, %s209, %s197, 128, 128, 8
        $region24: #{tpu_custom_call.1} parent=15 // pred_fallthru
          _
        // Predicated region
        $region25: #{tpu_custom_call.1} parent=15 // pred_check
          %p215 = pneg %p94
        $region26: #{tpu_custom_call.1} parent=15 // pred_check_branch
          %217 = sbr.rel (%p215) target = $region28
        $region27: #{tpu_custom_call.1} parent=15 // pred_region
          %s218 = sand.u32 %s22, 1
          %s219 = scalar_lea.sflag [#allocation6], %s218
          %s220 = sand.u32 %s84, 1
          %s221 = smul.addr %s220, 32
          %s222 = scalar_lea.vmem [#allocation7], %s221
          %224 = vsyncadd %s219, 0
          %s225 = smul.addr %s22, 4
          %s226 = smul.addr %s225, 8
          %s227 = scalar_lea.hbm %s2, %s226
          %s228 = sshll.u32 %s227, 4
          %s229 = int_to_ptr.hbm [resolvable:$true] %s228
          %s230 = sshll.u32 %s222, 4
          %s231 = int_to_ptr.vmem [resolvable:$true] %s230
          %236 = dma.hbm_to_vmem [thread:$0]  %s229, 512, %s231, %s219, 128, 128, 8
        $region28: #{tpu_custom_call.1} parent=15 // pred_fallthru
          _
        // Predicated region
        $region29: #{tpu_custom_call.1} parent=15 // pred_check
          %p237 = pneg %p120
        $region30: #{tpu_custom_call.1} parent=15 // pred_check_branch
          %239 = sbr.rel (%p237) target = $region32
        $region31: #{tpu_custom_call.1} parent=15 // pred_region
          %s240 = sand.u32 %s110, 1
          %s241 = scalar_lea.sflag [#allocation9], %s240
          %s242 = sand.u32 %s110, 1
          %s243 = smul.addr %s242, 8
          %s244 = scalar_lea.vmem [#allocation8], %s243
          %246 = vsyncadd %s241, 0
          %s247 = smul.addr %s22, 8
          %s248 = scalar_lea.hbm %s3, %s247
          %s250 = sshll.u32 %s248, 4
          %s251 = int_to_ptr.hbm [resolvable:$true] %s250
          %s252 = sshll.u32 %s244, 4
          %s253 = int_to_ptr.vmem [resolvable:$true] %s252
          %255 = dma.hbm_to_vmem [thread:$0]  %s251, 128, %s253, %s241
        $region32: #{tpu_custom_call.1} parent=15 // pred_fallthru
          _
      $region16: #{tpu_custom_call.1} parent=5 // pred_fallthru
        _
      %p256 = scmp.le.s32.totalorder 1, %s22
      %p257 = scmp.lt.s32.totalorder %s22, 3
      %p258 = pnand %p256, %p257
      %p259 = pneg %p258
      // Predicated region
      $region33: #{tpu_custom_call.1} parent=5 // pred_check
        _
      $region34: #{tpu_custom_call.1} parent=5 // pred_check_branch
        %261 = sbr.rel (%p258) target = $region36
      $region35: #{tpu_custom_call.1} parent=5 // pred_region
        %s262 = ssub.s32 %s22, 1
        %s263 = sand.u32 %s35, 1
        %s264 = scalar_lea.sflag [#allocation3], %s263
        %s265 = sand.u32 %s35, 1
        %s266 = smul.addr %s265, 32
        %s267 = scalar_lea.vmem [#allocation2], %s266
        // Predicated region
        $region37: #{tpu_custom_call.1} parent=35 // pred_check
          %p268 = pneg %p48
        $region38: #{tpu_custom_call.1} parent=35 // pred_check_branch
          %270 = sbr.rel (%p268) target = $region40
        $region39: #{tpu_custom_call.1} parent=35 // pred_region
          %272 = dma.done %s264, 512
        $region40: #{tpu_custom_call.1} parent=35 // pred_fallthru
          _
        %s273 = sand.u32 %s27, 1
        %s274 = scalar_lea.sflag [#allocation6], %s273
        %s275 = sand.u32 %s61, 1
        %s276 = smul.addr %s275, 168
        %s277 = scalar_lea.vmem [#allocation5], %s276
        // Predicated region
        $region41: #{tpu_custom_call.1} parent=35 // pred_check
          %p278 = pneg %p74
        $region42: #{tpu_custom_call.1} parent=35 // pred_check_branch
          %280 = sbr.rel (%p278) target = $region44
        $region43: #{tpu_custom_call.1} parent=35 // pred_region
          %282 = dma.done %s274, 2688
        $region44: #{tpu_custom_call.1} parent=35 // pred_fallthru
          _
        %s283 = sand.u32 %s27, 1
        %s284 = scalar_lea.sflag [#allocation6], %s283
        %s285 = sand.u32 %s87, 1
        %s286 = smul.addr %s285, 32
        %s287 = scalar_lea.vmem [#allocation7], %s286
        // Predicated region
        $region45: #{tpu_custom_call.1} parent=35 // pred_check
          %p288 = pneg %p100
        $region46: #{tpu_custom_call.1} parent=35 // pred_check_branch
          %290 = sbr.rel (%p288) target = $region48
        $region47: #{tpu_custom_call.1} parent=35 // pred_region
          %292 = dma.done %s284, 512
        $region48: #{tpu_custom_call.1} parent=35 // pred_fallthru
          _
        %s293 = sand.u32 %s113, 1
        %s294 = scalar_lea.sflag [#allocation9], %s293
        %s295 = sand.u32 %s113, 1
        %s296 = smul.addr %s295, 8
        %s297 = scalar_lea.vmem [#allocation8], %s296
        // Predicated region
        $region49: #{tpu_custom_call.1} parent=35 // pred_check
          %p298 = pneg %p126
        $region50: #{tpu_custom_call.1} parent=35 // pred_check_branch
          %300 = sbr.rel (%p298) target = $region52
        $region51: #{tpu_custom_call.1} parent=35 // pred_region
          %302 = dma.done %s294, 128
        $region52: #{tpu_custom_call.1} parent=35 // pred_fallthru
          _
        %s303 = sand.u32 %s35, 1
        %s304 = scalar_lea.sflag [#allocation3], %s303
        %s305 = sand.u32 %s35, 1
        %s306 = smul.addr %s305, 32
        %s307 = scalar_lea.vmem [#allocation2], %s306
        %p308 = pneg %p48
        %p309 = pneg %p45
        %s310 = sand.u32 %s27, 1
        %s311 = scalar_lea.sflag [#allocation6], %s310
        %s312 = sand.u32 %s61, 1
        %s313 = smul.addr %s312, 168
        %s314 = scalar_lea.vmem [#allocation5], %s313
        %p315 = pneg %p74
        %p316 = pneg %p71
        %s317 = sand.u32 %s27, 1
        %s318 = scalar_lea.sflag [#allocation6], %s317
        %s319 = sand.u32 %s87, 1
        %s320 = smul.addr %s319, 32
        %s321 = scalar_lea.vmem [#allocation7], %s320
        %p322 = pneg %p100
        %p323 = pneg %p97
        %s324 = sand.u32 %s113, 1
        %s325 = scalar_lea.sflag [#allocation9], %s324
        %s326 = sand.u32 %s113, 1
        %s327 = smul.addr %s326, 8
        %s328 = scalar_lea.vmem [#allocation8], %s327
        %p329 = pneg %p126
        %p330 = pneg %p123
        %p331 = pneg %p152
        %p332 = pneg %p149
        %s333 = sand.u32 %s139, 1
        %s334 = scalar_lea.sflag [#allocation4], %s333
        %s335 = sand.u32 %s139, 1
        %s336 = smul.addr %s335, 8
        %s337 = scalar_lea.vmem [#allocation10], %s336
        %v338 = vld [vmem:[%s297] sm:$0xff]
        %vm339 = vcmp.gt.s32.totalorder %v338, 0
        %v340 = vsel %vm339, 1, 0
        %v341 = vcvt.s32.f32 %v340
        %342 = vadd.xlane.f32.xlu0 %v341
        %v343 = vpop.xlane.xlu0 %342
        %v344 = vrot.slane %v343, 4
        %v345 = vadd.f32 %v343, %v344
        %v346 = vrot.slane %v345, 2
        %v347 = vadd.f32 %v345, %v346
        %v348 = vrot.slane %v347, 1
        %v349 = vadd.f32 %v347, %v348
        %v350 = vld [vmem:[%s277] sm:$0xff]
        %s351 = scalar_lea.vmem %s277, 8 [#allocation5]
        %v352 = vld [vmem:[%s351] sm:$0xff]
        %v353 = vmax.f32 %v350, %v352
        %s354 = scalar_lea.vmem %s277, 16 [#allocation5]
        %v355 = vld [vmem:[%s354] sm:$0xff]
        %v356 = vmax.f32 %v353, %v355
        %s357 = scalar_lea.vmem %s277, 24 [#allocation5]
        %v358 = vld [vmem:[%s357] sm:$0xff]
        %v359 = vmax.f32 %v356, %v358
        %s360 = scalar_lea.vmem %s277, 32 [#allocation5]
        %v361 = vld [vmem:[%s360] sm:$0xff]
        %v362 = vmax.f32 %v359, %v361
        %s363 = scalar_lea.vmem %s277, 40 [#allocation5]
        %v364 = vld [vmem:[%s363] sm:$0xff]
        %v365 = vmax.f32 %v362, %v364
        %s366 = scalar_lea.vmem %s277, 48 [#allocation5]
        %v367 = vld [vmem:[%s366] sm:$0xff]
        %v368 = vmax.f32 %v365, %v367
        %s369 = scalar_lea.vmem %s277, 56 [#allocation5]
        %v370 = vld [vmem:[%s369] sm:$0xff]
        %v371 = vmax.f32 %v368, %v370
        %s372 = scalar_lea.vmem %s277, 64 [#allocation5]
        %v373 = vld [vmem:[%s372] sm:$0xff]
        %v374 = vmax.f32 %v371, %v373
        %s375 = scalar_lea.vmem %s277, 72 [#allocation5]
        %v376 = vld [vmem:[%s375] sm:$0xff]
        %v377 = vmax.f32 %v374, %v376
        %s378 = scalar_lea.vmem %s277, 80 [#allocation5]
        %v379 = vld [vmem:[%s378] sm:$0xff]
        %v380 = vmax.f32 %v377, %v379
        %s381 = scalar_lea.vmem %s277, 88 [#allocation5]
        %v382 = vld [vmem:[%s381] sm:$0xff]
        %v383 = vmax.f32 %v380, %v382
        %s384 = scalar_lea.vmem %s277, 96 [#allocation5]
        %v385 = vld [vmem:[%s384] sm:$0xff]
        %v386 = vmax.f32 %v383, %v385
        %s387 = scalar_lea.vmem %s277, 104 [#allocation5]
        %v388 = vld [vmem:[%s387] sm:$0xff]
        %v389 = vmax.f32 %v386, %v388
        %s390 = scalar_lea.vmem %s277, 112 [#allocation5]
        %v391 = vld [vmem:[%s390] sm:$0xff]
        %v392 = vmax.f32 %v389, %v391
        %s393 = scalar_lea.vmem %s277, 120 [#allocation5]
        %v394 = vld [vmem:[%s393] sm:$0xff]
        %v395 = vmax.f32 %v392, %v394
        %s396 = scalar_lea.vmem %s277, 128 [#allocation5]
        %v397 = vld [vmem:[%s396] sm:$0xff]
        %v398 = vmax.f32 %v395, %v397
        %s399 = scalar_lea.vmem %s277, 136 [#allocation5]
        %v400 = vld [vmem:[%s399] sm:$0xff]
        %v401 = vmax.f32 %v398, %v400
        %s402 = scalar_lea.vmem %s277, 144 [#allocation5]
        %v403 = vld [vmem:[%s402] sm:$0xff]
        %v404 = vmax.f32 %v401, %v403
        %s405 = scalar_lea.vmem %s277, 152 [#allocation5]
        %v406 = vld [vmem:[%s405] sm:$0xff]
        %v407 = vmax.f32 %v404, %v406
        %s408 = scalar_lea.vmem %s277, 160 [#allocation5]
        %v409 = vld [vmem:[%s408] sm:$0xff]
        %v410 = vmax.f32 %v407, %v409
        %v411 = vsub.f32 %v350, %v410
        %v412 = vmul.f32 %v411, 1.442695
        %v413 = vpow.pop %v412
        %v414 = vadd.f32 %v413, 0.0
        %vm415 = vcmp.eq.s32.totalorder %v338, 0
        %v416 = vsel %vm415, %v350, 0.0
        %v417 = vadd.f32 %v416, 0.0
        %v418 = vsub.f32 %v352, %v410
        %v419 = vmul.f32 %v418, 1.442695
        %v420 = vpow.pop %v419
        %v421 = vadd.f32 %v414, %v420
        %vm422 = vcmp.eq.s32.totalorder %v338, 1
        %v423 = vsel %vm422, %v352, 0.0
        %v424 = vadd.f32 %v417, %v423
        %v425 = vsub.f32 %v355, %v410
        %v426 = vmul.f32 %v425, 1.442695
        %v427 = vpow.pop %v426
        %v428 = vadd.f32 %v421, %v427
        %vm429 = vcmp.eq.s32.totalorder %v338, 2
        %v430 = vsel %vm429, %v355, 0.0
        %v431 = vadd.f32 %v424, %v430
        %v432 = vsub.f32 %v358, %v410
        %v433 = vmul.f32 %v432, 1.442695
        %v434 = vpow.pop %v433
        %v435 = vadd.f32 %v428, %v434
        %vm436 = vcmp.eq.s32.totalorder %v338, 3
        %v437 = vsel %vm436, %v358, 0.0
        %v438 = vadd.f32 %v431, %v437
        %v439 = vsub.f32 %v361, %v410
        %v440 = vmul.f32 %v439, 1.442695
        %v441 = vpow.pop %v440
        %v442 = vadd.f32 %v435, %v441
        %vm443 = vcmp.eq.s32.totalorder %v338, 4
        %v444 = vsel %vm443, %v361, 0.0
        %v445 = vadd.f32 %v438, %v444
        %v446 = vsub.f32 %v364, %v410
        %v447 = vmul.f32 %v446, 1.442695
        %v448 = vpow.pop %v447
        %v449 = vadd.f32 %v442, %v448
        %vm450 = vcmp.eq.s32.totalorder %v338, 5
        %v451 = vsel %vm450, %v364, 0.0
        %v452 = vadd.f32 %v445, %v451
        %v453 = vsub.f32 %v367, %v410
        %v454 = vmul.f32 %v453, 1.442695
        %v455 = vpow.pop %v454
        %v456 = vadd.f32 %v449, %v455
        %vm457 = vcmp.eq.s32.totalorder %v338, 6
        %v458 = vsel %vm457, %v367, 0.0
        %v459 = vadd.f32 %v452, %v458
        %v460 = vsub.f32 %v370, %v410
        %v461 = vmul.f32 %v460, 1.442695
        %v462 = vpow.pop %v461
        %v463 = vadd.f32 %v456, %v462
        %vm464 = vcmp.eq.s32.totalorder %v338, 7
        %v465 = vsel %vm464, %v370, 0.0
        %v466 = vadd.f32 %v459, %v465
        %v467 = vsub.f32 %v373, %v410
        %v468 = vmul.f32 %v467, 1.442695
        %v469 = vpow.pop %v468
        %v470 = vadd.f32 %v463, %v469
        %vm471 = vcmp.eq.s32.totalorder %v338, 8
        %v472 = vsel %vm471, %v373, 0.0
        %v473 = vadd.f32 %v466, %v472
        %v474 = vsub.f32 %v376, %v410
        %v475 = vmul.f32 %v474, 1.442695
        %v476 = vpow.pop %v475
        %v477 = vadd.f32 %v470, %v476
        %vm478 = vcmp.eq.s32.totalorder %v338, 9
        %v479 = vsel %vm478, %v376, 0.0
        %v480 = vadd.f32 %v473, %v479
        %v481 = vsub.f32 %v379, %v410
        %v482 = vmul.f32 %v481, 1.442695
        %v483 = vpow.pop %v482
        %v484 = vadd.f32 %v477, %v483
        %vm485 = vcmp.eq.s32.totalorder %v338, 10
        %v486 = vsel %vm485, %v379, 0.0
        %v487 = vadd.f32 %v480, %v486
        %v488 = vsub.f32 %v382, %v410
        %v489 = vmul.f32 %v488, 1.442695
        %v490 = vpow.pop %v489
        %v491 = vadd.f32 %v484, %v490
        %vm492 = vcmp.eq.s32.totalorder %v338, 11
        %v493 = vsel %vm492, %v382, 0.0
        %v494 = vadd.f32 %v487, %v493
        %v495 = vsub.f32 %v385, %v410
        %v496 = vmul.f32 %v495, 1.442695
        %v497 = vpow.pop %v496
        %v498 = vadd.f32 %v491, %v497
        %vm499 = vcmp.eq.s32.totalorder %v338, 12
        %v500 = vsel %vm499, %v385, 0.0
        %v501 = vadd.f32 %v494, %v500
        %v502 = vsub.f32 %v388, %v410
        %v503 = vmul.f32 %v502, 1.442695
        %v504 = vpow.pop %v503
        %v505 = vadd.f32 %v498, %v504
        %vm506 = vcmp.eq.s32.totalorder %v338, 13
        %v507 = vsel %vm506, %v388, 0.0
        %v508 = vadd.f32 %v501, %v507
        %v509 = vsub.f32 %v391, %v410
        %v510 = vmul.f32 %v509, 1.442695
        %v511 = vpow.pop %v510
        %v512 = vadd.f32 %v505, %v511
        %vm513 = vcmp.eq.s32.totalorder %v338, 14
        %v514 = vsel %vm513, %v391, 0.0
        %v515 = vadd.f32 %v508, %v514
        %v516 = vsub.f32 %v394, %v410
        %v517 = vmul.f32 %v516, 1.442695
        %v518 = vpow.pop %v517
        %v519 = vadd.f32 %v512, %v518
        %vm520 = vcmp.eq.s32.totalorder %v338, 15
        %v521 = vsel %vm520, %v394, 0.0
        %v522 = vadd.f32 %v515, %v521
        %v523 = vsub.f32 %v397, %v410
        %v524 = vmul.f32 %v523, 1.442695
        %v525 = vpow.pop %v524
        %v526 = vadd.f32 %v519, %v525
        %vm527 = vcmp.eq.s32.totalorder %v338, 16
        %v528 = vsel %vm527, %v397, 0.0
        %v529 = vadd.f32 %v522, %v528
        %v530 = vsub.f32 %v400, %v410
        %v531 = vmul.f32 %v530, 1.442695
        %v532 = vpow.pop %v531
        %v533 = vadd.f32 %v526, %v532
        %vm534 = vcmp.eq.s32.totalorder %v338, 17
        %v535 = vsel %vm534, %v400, 0.0
        %v536 = vadd.f32 %v529, %v535
        %v537 = vsub.f32 %v403, %v410
        %v538 = vmul.f32 %v537, 1.442695
        %v539 = vpow.pop %v538
        %v540 = vadd.f32 %v533, %v539
        %vm541 = vcmp.eq.s32.totalorder %v338, 18
        %v542 = vsel %vm541, %v403, 0.0
        %v543 = vadd.f32 %v536, %v542
        %v544 = vsub.f32 %v406, %v410
        %v545 = vmul.f32 %v544, 1.442695
        %v546 = vpow.pop %v545
        %v547 = vadd.f32 %v540, %v546
        %vm548 = vcmp.eq.s32.totalorder %v338, 19
        %v549 = vsel %vm548, %v406, 0.0
        %v550 = vadd.f32 %v543, %v549
        %v551 = vsub.f32 %v409, %v410
        %v552 = vmul.f32 %v551, 1.442695
        %v553 = vpow.pop %v552
        %v554 = vadd.f32 %v547, %v553
        %vm555 = vcmp.eq.s32.totalorder %v338, 20
        %v556 = vsel %vm555, %v409, 0.0
        %v557 = vadd.f32 %v550, %v556
        %v558 = vlog2.pop %v554
        %v559 = vmul.f32 %v558, 0.6931472
        %v560 = vadd.f32 %v410, %v559
        %v561 = vsub.f32 %v560, %v557
        %v562 = vld [vmem:[%s267] sm:$0xff]
        %v563 = vld [vmem:[%s287] sm:$0xff]
        %v564 = vsub.f32 %v562, %v563
        %v565 = vand.u32 2147483647, %v564
        %vm566 = vcmp.lt.f32.partialorder %v565, 1.0
        %v567 = vmul.f32 %v564, 0.5
        %v568 = vmul.f32 %v567, %v564
        %v569 = vsub.f32 %v565, 0.5
        %v570 = vsel %vm566, %v568, %v569
        %v571 = vadd.f32 %v570, 0.0
        %s572 = scalar_lea.vmem %s267, 8 [#allocation2]
        %v573 = vld [vmem:[%s572] sm:$0xff]
        %s574 = scalar_lea.vmem %s287, 8 [#allocation7]
        %v575 = vld [vmem:[%s574] sm:$0xff]
        %v576 = vsub.f32 %v573, %v575
        %v577 = vand.u32 2147483647, %v576
        %vm578 = vcmp.lt.f32.partialorder %v577, 1.0
        %v579 = vmul.f32 %v576, 0.5
        %v580 = vmul.f32 %v579, %v576
        %v581 = vsub.f32 %v577, 0.5
        %v582 = vsel %vm578, %v580, %v581
        %v583 = vadd.f32 %v571, %v582
        %s584 = scalar_lea.vmem %s267, 16 [#allocation2]
        %v585 = vld [vmem:[%s584] sm:$0xff]
        %s586 = scalar_lea.vmem %s287, 16 [#allocation7]
        %v587 = vld [vmem:[%s586] sm:$0xff]
        %v588 = vsub.f32 %v585, %v587
        %v589 = vand.u32 2147483647, %v588
        %vm590 = vcmp.lt.f32.partialorder %v589, 1.0
        %v591 = vmul.f32 %v588, 0.5
        %v592 = vmul.f32 %v591, %v588
        %v593 = vsub.f32 %v589, 0.5
        %v594 = vsel %vm590, %v592, %v593
        %v595 = vadd.f32 %v583, %v594
        %s596 = scalar_lea.vmem %s267, 24 [#allocation2]
        %v597 = vld [vmem:[%s596] sm:$0xff]
        %s598 = scalar_lea.vmem %s287, 24 [#allocation7]
        %v599 = vld [vmem:[%s598] sm:$0xff]
        %v600 = vsub.f32 %v597, %v599
        %v601 = vand.u32 2147483647, %v600
        %vm602 = vcmp.lt.f32.partialorder %v601, 1.0
        %v603 = vmul.f32 %v600, 0.5
        %v604 = vmul.f32 %v603, %v600
        %v605 = vsub.f32 %v601, 0.5
        %v606 = vsel %vm602, %v604, %v605
        %v607 = vadd.f32 %v595, %v606
        %v608 = vmul.f32 %v607, %v341
        %609 = vadd.xlane.f32.xlu0 %v608
        %v610 = vpop.xlane.xlu0 %609
        %v611 = vrot.slane %v610, 4
        %v612 = vadd.f32 %v610, %v611
        %v613 = vrot.slane %v612, 2
        %v614 = vadd.f32 %v612, %v613
        %v615 = vrot.slane %v614, 1
        %v616 = vadd.f32 %v614, %v615
        %v617 = vlaneseq
        %v618 = vshrl.u32 %v617, 7
        %v619 = vlaneseq
        %v620 = vand.u32 %v619, 127
        %v621 = vmul.u32 %v618, 128
        %v622 = vadd.s32 %v621, %v620
        %vm623 = vcmp.lt.s32.totalorder %v622, 512
        %vm624 = vmxor %vm339, 1
        %vm625 = vmand %vm623, %vm624
        %v626 = vsel %vm625, %v561, 0.0
        %v627 = vmul.f32 %v349, 3.0
        %v628 = vmin.f32 %v627, 512.0
        %629 = vmax.xlane.f32.xlu0 %v626
        %v630 = vpop.xlane.xlu0 %629
        %v631 = vrot.slane %v630, 4
        %v632 = vmax.f32 %v630, %v631
        %v633 = vrot.slane %v632, 2
        %v634 = vmax.f32 %v632, %v633
        %v635 = vrot.slane %v634, 1
        %v636 = vmax.f32 %v634, %v635
        %v637 = vadd.f32 %v636, -1.0
        %v638 = vmul.f32 %v637, 0.5
        %vm639 = vcmp.gt.f32.partialorder %v626, %v638
        %v640 = vsel %vm639, 1, 0
        %v641 = vcvt.s32.f32 %v640
        %642 = vadd.xlane.f32.xlu0 %v641
        %v643 = vpop.xlane.xlu0 %642
        %v644 = vrot.slane %v643, 4
        %v645 = vadd.f32 %v643, %v644
        %v646 = vrot.slane %v645, 2
        %v647 = vadd.f32 %v645, %v646
        %v648 = vrot.slane %v647, 1
        %v649 = vadd.f32 %v647, %v648
        %vm650 = vcmp.ge.f32.partialorder %v649, %v628
        %v651 = vsel %vm650, %v638, -1.0
        %v652 = vsel %vm650, %v636, %v638
        %v653 = vadd.f32 %v651, %v652
        %v654 = vmul.f32 %v653, 0.5
        %vm655 = vcmp.gt.f32.partialorder %v626, %v654
        %v656 = vsel %vm655, 1, 0
        %v657 = vcvt.s32.f32 %v656
        %658 = vadd.xlane.f32.xlu0 %v657
        %v659 = vpop.xlane.xlu0 %658
        %v660 = vrot.slane %v659, 4
        %v661 = vadd.f32 %v659, %v660
        %v662 = vrot.slane %v661, 2
        %v663 = vadd.f32 %v661, %v662
        %v664 = vrot.slane %v663, 1
        %v665 = vadd.f32 %v663, %v664
        %vm666 = vcmp.ge.f32.partialorder %v665, %v628
        %v667 = vsel %vm666, %v654, %v651
        %v668 = vsel %vm666, %v652, %v654
        %v669 = vadd.f32 %v667, %v668
        %v670 = vmul.f32 %v669, 0.5
        %vm671 = vcmp.gt.f32.partialorder %v626, %v670
        %v672 = vsel %vm671, 1, 0
        %v673 = vcvt.s32.f32 %v672
        %674 = vadd.xlane.f32.xlu0 %v673
        %v675 = vpop.xlane.xlu0 %674
        %v676 = vrot.slane %v675, 4
        %v677 = vadd.f32 %v675, %v676
        %v678 = vrot.slane %v677, 2
        %v679 = vadd.f32 %v677, %v678
        %v680 = vrot.slane %v679, 1
        %v681 = vadd.f32 %v679, %v680
        %vm682 = vcmp.ge.f32.partialorder %v681, %v628
        %v683 = vsel %vm682, %v670, %v667
        %v684 = vsel %vm682, %v668, %v670
        %v685 = vadd.f32 %v683, %v684
        %v686 = vmul.f32 %v685, 0.5
        %vm687 = vcmp.gt.f32.partialorder %v626, %v686
        %v688 = vsel %vm687, 1, 0
        %v689 = vcvt.s32.f32 %v688
        %690 = vadd.xlane.f32.xlu0 %v689
        %v691 = vpop.xlane.xlu0 %690
        %v692 = vrot.slane %v691, 4
        %v693 = vadd.f32 %v691, %v692
        %v694 = vrot.slane %v693, 2
        %v695 = vadd.f32 %v693, %v694
        %v696 = vrot.slane %v695, 1
        %v697 = vadd.f32 %v695, %v696
        %vm698 = vcmp.ge.f32.partialorder %v697, %v628
        %v699 = vsel %vm698, %v686, %v683
        %v700 = vsel %vm698, %v684, %v686
        %v701 = vadd.f32 %v699, %v700
        %v702 = vmul.f32 %v701, 0.5
        %vm703 = vcmp.gt.f32.partialorder %v626, %v702
        %v704 = vsel %vm703, 1, 0
        %v705 = vcvt.s32.f32 %v704
        %706 = vadd.xlane.f32.xlu0 %v705
        %v707 = vpop.xlane.xlu0 %706
        %v708 = vrot.slane %v707, 4
        %v709 = vadd.f32 %v707, %v708
        %v710 = vrot.slane %v709, 2
        %v711 = vadd.f32 %v709, %v710
        %v712 = vrot.slane %v711, 1
        %v713 = vadd.f32 %v711, %v712
        %vm714 = vcmp.ge.f32.partialorder %v713, %v628
        %v715 = vsel %vm714, %v702, %v699
        %v716 = vsel %vm714, %v700, %v702
        %v717 = vadd.f32 %v715, %v716
        %v718 = vmul.f32 %v717, 0.5
        %vm719 = vcmp.gt.f32.partialorder %v626, %v718
        %v720 = vsel %vm719, 1, 0
        %v721 = vcvt.s32.f32 %v720
        %722 = vadd.xlane.f32.xlu0 %v721
        %v723 = vpop.xlane.xlu0 %722
        %v724 = vrot.slane %v723, 4
        %v725 = vadd.f32 %v723, %v724
        %v726 = vrot.slane %v725, 2
        %v727 = vadd.f32 %v725, %v726
        %v728 = vrot.slane %v727, 1
        %v729 = vadd.f32 %v727, %v728
        %vm730 = vcmp.ge.f32.partialorder %v729, %v628
        %v731 = vsel %vm730, %v718, %v715
        %v732 = vsel %vm730, %v716, %v718
        %v733 = vadd.f32 %v731, %v732
        %v734 = vmul.f32 %v733, 0.5
        %vm735 = vcmp.gt.f32.partialorder %v626, %v734
        %v736 = vsel %vm735, 1, 0
        %v737 = vcvt.s32.f32 %v736
        %738 = vadd.xlane.f32.xlu0 %v737
        %v739 = vpop.xlane.xlu0 %738
        %v740 = vrot.slane %v739, 4
        %v741 = vadd.f32 %v739, %v740
        %v742 = vrot.slane %v741, 2
        %v743 = vadd.f32 %v741, %v742
        %v744 = vrot.slane %v743, 1
        %v745 = vadd.f32 %v743, %v744
        %vm746 = vcmp.ge.f32.partialorder %v745, %v628
        %v747 = vsel %vm746, %v734, %v731
        %v748 = vsel %vm746, %v732, %v734
        %v749 = vadd.f32 %v747, %v748
        %v750 = vmul.f32 %v749, 0.5
        %vm751 = vcmp.gt.f32.partialorder %v626, %v750
        %v752 = vsel %vm751, 1, 0
        %v753 = vcvt.s32.f32 %v752
        %754 = vadd.xlane.f32.xlu0 %v753
        %v755 = vpop.xlane.xlu0 %754
        %v756 = vrot.slane %v755, 4
        %v757 = vadd.f32 %v755, %v756
        %v758 = vrot.slane %v757, 2
        %v759 = vadd.f32 %v757, %v758
        %v760 = vrot.slane %v759, 1
        %v761 = vadd.f32 %v759, %v760
        %vm762 = vcmp.ge.f32.partialorder %v761, %v628
        %v763 = vsel %vm762, %v750, %v747
        %v764 = vsel %vm762, %v748, %v750
        %v765 = vadd.f32 %v763, %v764
        %v766 = vmul.f32 %v765, 0.5
        %vm767 = vcmp.gt.f32.partialorder %v626, %v766
        %v768 = vsel %vm767, 1, 0
        %v769 = vcvt.s32.f32 %v768
        %770 = vadd.xlane.f32.xlu0 %v769
        %v771 = vpop.xlane.xlu0 %770
        %v772 = vrot.slane %v771, 4
        %v773 = vadd.f32 %v771, %v772
        %v774 = vrot.slane %v773, 2
        %v775 = vadd.f32 %v773, %v774
        %v776 = vrot.slane %v775, 1
        %v777 = vadd.f32 %v775, %v776
        %vm778 = vcmp.ge.f32.partialorder %v777, %v628
        %v779 = vsel %vm778, %v766, %v763
        %v780 = vsel %vm778, %v764, %v766
        %v781 = vadd.f32 %v779, %v780
        %v782 = vmul.f32 %v781, 0.5
        %vm783 = vcmp.gt.f32.partialorder %v626, %v782
        %v784 = vsel %vm783, 1, 0
        %v785 = vcvt.s32.f32 %v784
        %786 = vadd.xlane.f32.xlu0 %v785
        %v787 = vpop.xlane.xlu0 %786
        %v788 = vrot.slane %v787, 4
        %v789 = vadd.f32 %v787, %v788
        %v790 = vrot.slane %v789, 2
        %v791 = vadd.f32 %v789, %v790
        %v792 = vrot.slane %v791, 1
        %v793 = vadd.f32 %v791, %v792
        %vm794 = vcmp.ge.f32.partialorder %v793, %v628
        %v795 = vsel %vm794, %v782, %v779
        %v796 = vsel %vm794, %v780, %v782
        %v797 = vadd.f32 %v795, %v796
        %v798 = vmul.f32 %v797, 0.5
        %vm799 = vcmp.gt.f32.partialorder %v626, %v798
        %v800 = vsel %vm799, 1, 0
        %v801 = vcvt.s32.f32 %v800
        %802 = vadd.xlane.f32.xlu0 %v801
        %v803 = vpop.xlane.xlu0 %802
        %v804 = vrot.slane %v803, 4
        %v805 = vadd.f32 %v803, %v804
        %v806 = vrot.slane %v805, 2
        %v807 = vadd.f32 %v805, %v806
        %v808 = vrot.slane %v807, 1
        %v809 = vadd.f32 %v807, %v808
        %vm810 = vcmp.ge.f32.partialorder %v809, %v628
        %v811 = vsel %vm810, %v798, %v795
        %v812 = vsel %vm810, %v796, %v798
        %v813 = vadd.f32 %v811, %v812
        %v814 = vmul.f32 %v813, 0.5
        %vm815 = vcmp.gt.f32.partialorder %v626, %v814
        %v816 = vsel %vm815, 1, 0
        %v817 = vcvt.s32.f32 %v816
        %818 = vadd.xlane.f32.xlu0 %v817
        %v819 = vpop.xlane.xlu0 %818
        %v820 = vrot.slane %v819, 4
        %v821 = vadd.f32 %v819, %v820
        %v822 = vrot.slane %v821, 2
        %v823 = vadd.f32 %v821, %v822
        %v824 = vrot.slane %v823, 1
        %v825 = vadd.f32 %v823, %v824
        %vm826 = vcmp.ge.f32.partialorder %v825, %v628
        %v827 = vsel %vm826, %v814, %v811
        %v828 = vsel %vm826, %v812, %v814
        %v829 = vadd.f32 %v827, %v828
        %v830 = vmul.f32 %v829, 0.5
        %vm831 = vcmp.gt.f32.partialorder %v626, %v830
        %v832 = vsel %vm831, 1, 0
        %v833 = vcvt.s32.f32 %v832
        %834 = vadd.xlane.f32.xlu0 %v833
        %v835 = vpop.xlane.xlu0 %834
        %v836 = vrot.slane %v835, 4
        %v837 = vadd.f32 %v835, %v836
        %v838 = vrot.slane %v837, 2
        %v839 = vadd.f32 %v837, %v838
        %v840 = vrot.slane %v839, 1
        %v841 = vadd.f32 %v839, %v840
        %vm842 = vcmp.ge.f32.partialorder %v841, %v628
        %v843 = vsel %vm842, %v830, %v827
        %v844 = vsel %vm842, %v828, %v830
        %v845 = vadd.f32 %v843, %v844
        %v846 = vmul.f32 %v845, 0.5
        %vm847 = vcmp.gt.f32.partialorder %v626, %v846
        %v848 = vsel %vm847, 1, 0
        %v849 = vcvt.s32.f32 %v848
        %850 = vadd.xlane.f32.xlu0 %v849
        %v851 = vpop.xlane.xlu0 %850
        %v852 = vrot.slane %v851, 4
        %v853 = vadd.f32 %v851, %v852
        %v854 = vrot.slane %v853, 2
        %v855 = vadd.f32 %v853, %v854
        %v856 = vrot.slane %v855, 1
        %v857 = vadd.f32 %v855, %v856
        %vm858 = vcmp.ge.f32.partialorder %v857, %v628
        %v859 = vsel %vm858, %v846, %v843
        %v860 = vsel %vm858, %v844, %v846
        %v861 = vadd.f32 %v859, %v860
        %v862 = vmul.f32 %v861, 0.5
        %vm863 = vcmp.gt.f32.partialorder %v626, %v862
        %v864 = vsel %vm863, 1, 0
        %v865 = vcvt.s32.f32 %v864
        %866 = vadd.xlane.f32.xlu0 %v865
        %v867 = vpop.xlane.xlu0 %866
        %v868 = vrot.slane %v867, 4
        %v869 = vadd.f32 %v867, %v868
        %v870 = vrot.slane %v869, 2
        %v871 = vadd.f32 %v869, %v870
        %v872 = vrot.slane %v871, 1
        %v873 = vadd.f32 %v871, %v872
        %vm874 = vcmp.ge.f32.partialorder %v873, %v628
        %v875 = vsel %vm874, %v862, %v859
        %v876 = vsel %vm874, %v860, %v862
        %v877 = vadd.f32 %v875, %v876
        %v878 = vmul.f32 %v877, 0.5
        %vm879 = vcmp.gt.f32.partialorder %v626, %v878
        %v880 = vsel %vm879, 1, 0
        %v881 = vcvt.s32.f32 %v880
        %882 = vadd.xlane.f32.xlu0 %v881
        %v883 = vpop.xlane.xlu0 %882
        %v884 = vrot.slane %v883, 4
        %v885 = vadd.f32 %v883, %v884
        %v886 = vrot.slane %v885, 2
        %v887 = vadd.f32 %v885, %v886
        %v888 = vrot.slane %v887, 1
        %v889 = vadd.f32 %v887, %v888
        %vm890 = vcmp.ge.f32.partialorder %v889, %v628
        %v891 = vsel %vm890, %v878, %v875
        %v892 = vsel %vm890, %v876, %v878
        %v893 = vadd.f32 %v891, %v892
        %v894 = vmul.f32 %v893, 0.5
        %vm895 = vcmp.gt.f32.partialorder %v626, %v894
        %v896 = vsel %vm895, 1, 0
        %v897 = vcvt.s32.f32 %v896
        %898 = vadd.xlane.f32.xlu0 %v897
        %v899 = vpop.xlane.xlu0 %898
        %v900 = vrot.slane %v899, 4
        %v901 = vadd.f32 %v899, %v900
        %v902 = vrot.slane %v901, 2
        %v903 = vadd.f32 %v901, %v902
        %v904 = vrot.slane %v903, 1
        %v905 = vadd.f32 %v903, %v904
        %vm906 = vcmp.ge.f32.partialorder %v905, %v628
        %v907 = vsel %vm906, %v894, %v891
        %v908 = vsel %vm906, %v892, %v894
        %v909 = vadd.f32 %v907, %v908
        %v910 = vmul.f32 %v909, 0.5
        %vm911 = vcmp.gt.f32.partialorder %v626, %v910
        %v912 = vsel %vm911, 1, 0
        %v913 = vcvt.s32.f32 %v912
        %914 = vadd.xlane.f32.xlu0 %v913
        %v915 = vpop.xlane.xlu0 %914
        %v916 = vrot.slane %v915, 4
        %v917 = vadd.f32 %v915, %v916
        %v918 = vrot.slane %v917, 2
        %v919 = vadd.f32 %v917, %v918
        %v920 = vrot.slane %v919, 1
        %v921 = vadd.f32 %v919, %v920
        %vm922 = vcmp.ge.f32.partialorder %v921, %v628
        %v923 = vsel %vm922, %v910, %v907
        %v924 = vsel %vm922, %v908, %v910
        %v925 = vadd.f32 %v923, %v924
        %v926 = vmul.f32 %v925, 0.5
        %vm927 = vcmp.gt.f32.partialorder %v626, %v926
        %v928 = vsel %vm927, 1, 0
        %v929 = vcvt.s32.f32 %v928
        %930 = vadd.xlane.f32.xlu0 %v929
        %v931 = vpop.xlane.xlu0 %930
        %v932 = vrot.slane %v931, 4
        %v933 = vadd.f32 %v931, %v932
        %v934 = vrot.slane %v933, 2
        %v935 = vadd.f32 %v933, %v934
        %v936 = vrot.slane %v935, 1
        %v937 = vadd.f32 %v935, %v936
        %vm938 = vcmp.ge.f32.partialorder %v937, %v628
        %v939 = vsel %vm938, %v926, %v923
        %v940 = vsel %vm938, %v924, %v926
        %v941 = vadd.f32 %v939, %v940
        %v942 = vmul.f32 %v941, 0.5
        %vm943 = vcmp.gt.f32.partialorder %v626, %v942
        %v944 = vsel %vm943, 1, 0
        %v945 = vcvt.s32.f32 %v944
        %946 = vadd.xlane.f32.xlu0 %v945
        %v947 = vpop.xlane.xlu0 %946
        %v948 = vrot.slane %v947, 4
        %v949 = vadd.f32 %v947, %v948
        %v950 = vrot.slane %v949, 2
        %v951 = vadd.f32 %v949, %v950
        %v952 = vrot.slane %v951, 1
        %v953 = vadd.f32 %v951, %v952
        %vm954 = vcmp.ge.f32.partialorder %v953, %v628
        %v955 = vsel %vm954, %v942, %v939
        %v956 = vsel %vm954, %v940, %v942
        %v957 = vadd.f32 %v955, %v956
        %v958 = vmul.f32 %v957, 0.5
        %vm959 = vcmp.gt.f32.partialorder %v626, %v958
        %v960 = vsel %vm959, 1, 0
        %v961 = vcvt.s32.f32 %v960
        %962 = vadd.xlane.f32.xlu0 %v961
        %v963 = vpop.xlane.xlu0 %962
        %v964 = vrot.slane %v963, 4
        %v965 = vadd.f32 %v963, %v964
        %v966 = vrot.slane %v965, 2
        %v967 = vadd.f32 %v965, %v966
        %v968 = vrot.slane %v967, 1
        %v969 = vadd.f32 %v967, %v968
        %vm970 = vcmp.ge.f32.partialorder %v969, %v628
        %v971 = vsel %vm970, %v958, %v955
        %v972 = vsel %vm970, %v956, %v958
        %v973 = vadd.f32 %v971, %v972
        %v974 = vmul.f32 %v973, 0.5
        %vm975 = vcmp.gt.f32.partialorder %v626, %v974
        %v976 = vsel %vm975, 1, 0
        %v977 = vcvt.s32.f32 %v976
        %978 = vadd.xlane.f32.xlu0 %v977
        %v979 = vpop.xlane.xlu0 %978
        %v980 = vrot.slane %v979, 4
        %v981 = vadd.f32 %v979, %v980
        %v982 = vrot.slane %v981, 2
        %v983 = vadd.f32 %v981, %v982
        %v984 = vrot.slane %v983, 1
        %v985 = vadd.f32 %v983, %v984
        %vm986 = vcmp.ge.f32.partialorder %v985, %v628
        %v987 = vsel %vm986, %v974, %v971
        %v988 = vsel %vm986, %v972, %v974
        %v989 = vadd.f32 %v987, %v988
        %v990 = vmul.f32 %v989, 0.5
        %vm991 = vcmp.gt.f32.partialorder %v626, %v990
        %v992 = vsel %vm991, 1, 0
        %v993 = vcvt.s32.f32 %v992
        %994 = vadd.xlane.f32.xlu0 %v993
        %v995 = vpop.xlane.xlu0 %994
        %v996 = vrot.slane %v995, 4
        %v997 = vadd.f32 %v995, %v996
        %v998 = vrot.slane %v997, 2
        %v999 = vadd.f32 %v997, %v998
        %v1000 = vrot.slane %v999, 1
        %v1001 = vadd.f32 %v999, %v1000
        %vm1002 = vcmp.ge.f32.partialorder %v1001, %v628
        %v1003 = vsel %vm1002, %v990, %v987
        %v1004 = vsel %vm1002, %v988, %v990
        %v1005 = vadd.f32 %v1003, %v1004
        %v1006 = vmul.f32 %v1005, 0.5
        %vm1007 = vcmp.gt.f32.partialorder %v626, %v1006
        %v1008 = vsel %vm1007, 1, 0
        %v1009 = vcvt.s32.f32 %v1008
        %1010 = vadd.xlane.f32.xlu0 %v1009
        %v1011 = vpop.xlane.xlu0 %1010
        %v1012 = vrot.slane %v1011, 4
        %v1013 = vadd.f32 %v1011, %v1012
        %v1014 = vrot.slane %v1013, 2
        %v1015 = vadd.f32 %v1013, %v1014
        %v1016 = vrot.slane %v1015, 1
        %v1017 = vadd.f32 %v1015, %v1016
        %vm1018 = vcmp.ge.f32.partialorder %v1017, %v628
        %v1019 = vsel %vm1018, %v1004, %v1006
        %vm1020 = vcmp.gt.f32.partialorder %v626, %v1019
        %v1021 = vsel %vm1020, 1, 0
        %v1022 = vcvt.s32.f32 %v1021
        %1023 = vadd.xlane.f32.xlu0 %v1022
        %v1024 = vpop.xlane.xlu0 %1023
        %v1025 = vrot.slane %v1024, 4
        %v1026 = vadd.f32 %v1024, %v1025
        %v1027 = vrot.slane %v1026, 2
        %v1028 = vadd.f32 %v1026, %v1027
        %v1029 = vrot.slane %v1028, 1
        %v1030 = vadd.f32 %v1028, %v1029
        %v1031 = vmul.f32 %v626, %v1022
        %1032 = vadd.xlane.f32.xlu0 %v1031
        %v1033 = vpop.xlane.xlu0 %1032
        %v1034 = vrot.slane %v1033, 4
        %v1035 = vadd.f32 %v1033, %v1034
        %v1036 = vrot.slane %v1035, 2
        %v1037 = vadd.f32 %v1035, %v1036
        %v1038 = vrot.slane %v1037, 1
        %v1039 = vadd.f32 %v1037, %v1038
        %v1040 = vsub.f32 %v628, %v1030
        %v1041 = vmax.f32 %v1040, 0.0
        %v1042 = vmul.f32 %v1041, %v1019
        %v1043 = vadd.f32 %v1039, %v1042
        %v1044 = vmul.f32 %v561, %v341
        %1045 = vadd.xlane.f32.xlu0 %v1044
        %v1046 = vpop.xlane.xlu0 %1045
        %v1047 = vrot.slane %v1046, 4
        %v1048 = vadd.f32 %v1046, %v1047
        %v1049 = vrot.slane %v1048, 2
        %v1050 = vadd.f32 %v1048, %v1049
        %v1051 = vrot.slane %v1050, 1
        %v1052 = vadd.f32 %v1050, %v1051
        %v1053 = vadd.f32 %v1052, %v1043
        %vm1054 = vcmp.eq.s32.totalorder %v618, 0
        %vm1055 = vcmp.eq.s32.totalorder %v618, 1
        %v1056 = vsel %vm1055, %v1053, %v349
        %v1057 = vsel %vm1054, %v616, %v1056
        %1058 = vst [vmem:[%s337] sm:$0xff] %v1057
        %s1059 = sand.u32 %s139, 1
        %s1060 = scalar_lea.sflag [#allocation4], %s1059
        %s1061 = sand.u32 %s139, 1
        %s1062 = smul.addr %s1061, 8
        %s1063 = scalar_lea.vmem [#allocation10], %s1062
        // Predicated region
        $region53: #{tpu_custom_call.1} parent=35 // pred_check
          %p1064 = pneg %p149
        $region54: #{tpu_custom_call.1} parent=35 // pred_check_branch
          %1066 = sbr.rel (%p1064) target = $region56
        $region55: #{tpu_custom_call.1} parent=35 // pred_region
          %1068 = vsyncadd %s1060, 0
          %s1069 = smul.addr %s27, 8
          %s1070 = scalar_lea.hbm %s4, %s1069
          %s1072 = sshll.u32 %s1063, 4
          %s1073 = int_to_ptr.vmem [resolvable:$true] %s1072
          %s1074 = sshll.u32 %s1070, 4
          %s1075 = int_to_ptr.hbm [resolvable:$true] %s1074
          %1077 = dma.vmem_to_hbm [thread:$0]  %s1073, 128, %s1075, %s1060
        $region56: #{tpu_custom_call.1} parent=35 // pred_fallthru
          _
      $region36: #{tpu_custom_call.1} parent=5 // pred_fallthru
        _
      %p1078 = scmp.le.s32.totalorder 2, %s22
      // Predicated region
      $region57: #{tpu_custom_call.1} parent=5 // pred_check
        %p1079 = pneg %p1078
      $region58: #{tpu_custom_call.1} parent=5 // pred_check_branch
        %1081 = sbr.rel (%p1079) target = $region60
      $region59: #{tpu_custom_call.1} parent=5 // pred_region
        %s1082 = ssub.s32 %s22, 2
        // Predicated region
        $region61: #{tpu_custom_call.1} parent=59 // pred_check
          %p1083 = pneg %p155
        $region62: #{tpu_custom_call.1} parent=59 // pred_check_branch
          %1085 = sbr.rel (%p1083) target = $region64
        $region63: #{tpu_custom_call.1} parent=59 // pred_region
          %s1086 = sand.u32 %s140, 1
          %s1087 = scalar_lea.sflag [#allocation4], %s1086
          %s1088 = sand.u32 %s140, 1
          %s1089 = smul.addr %s1088, 8
          %s1090 = scalar_lea.vmem [#allocation10], %s1089
          %1092 = dma.done %s1087, 128
        $region64: #{tpu_custom_call.1} parent=59 // pred_fallthru
          _
      $region60: #{tpu_custom_call.1} parent=5 // pred_fallthru
        _
    $region6: #{tpu_custom_call.1} parent=1 // loop_footer
      %s26 = sadd.s32 1, %s22
    $region7: #{tpu_custom_call.1} parent=1 // loop_footer_branch
      %21 = sbr.rel target = $region3
    $region8: #{tpu_custom_call.1} parent=1 // loop_exit
      _
    %1093 = vsyncpa [#allocation3], 1
    %s1094 = scalar_lea.sflag [#allocation3], 1
    %1095 = vsyncpa %s1094, 1
    %1096 = vsyncpa [#allocation6], 1
    %s1097 = scalar_lea.sflag [#allocation6], 1
    %1098 = vsyncpa %s1097, 1
    %1099 = vsyncpa [#allocation9], 1
    %s1100 = scalar_lea.sflag [#allocation9], 1
    %1101 = vsyncpa %s1100, 1
    %1102 = vsyncpa [#allocation4], 1
    %s1103 = scalar_lea.sflag [#allocation4], 1
    %1104 = vsyncpa %s1103, 1

</llo_original>
